<compile_context>
chip_gen: v7x
topology: tpu7x:2x2x1
jax: 0.10.0
libtpu: 0.0.40
codegen_flags: <defaults>
</compile_context>

<pallas_src>
import functools

import jax
import jax.numpy as jnp
from jax.experimental import pallas as pl
from jax.experimental.pallas import tpu as pltpu

VTH = 0.2        # v_threshold used by the spiking neuron and tdBatchNorm
TAU = 0.25       # membrane decay
BN_EPS = 1e-5    # BatchNorm eps (PyTorch default)
SPIKE_DTYPE = jnp.bfloat16   # spikes are 0/1 -> exactly representable in bf16


# ----------------------------------------------------------------------------
# Tiling helpers
# ----------------------------------------------------------------------------
def _pick_tile(M, cands=(512, 256, 128, 64, 32, 16, 8)):
    """Largest tile dividing M (no padding); fall back to padded 128-tiles."""
    for c in cands:
        if M % c == 0:
            return c, M
    Mp = ((M + 127) // 128) * 128
    return 128, Mp


def _pick_bs(HW, cap=512):
    """Spatial block for the spike kernel: full HW if small, else a /8 divisor."""
    if HW <= cap:
        return HW
    for c in (512, 256, 128, 64, 32, 16, 8):
        if HW % c == 0:
            return c
    return HW


# ----------------------------------------------------------------------------
# Pallas kernels
# ----------------------------------------------------------------------------
def _mm_bias_stats_kernel(a_ref, b_ref, bias_ref, y_ref, st_ref):
    # a:(tm,K) bf16, b:(K,N) bf16, bias:(1,N) f32
    raw = jnp.dot(a_ref[...], b_ref[...], preferred_element_type=jnp.float32)
    y_ref[...] = raw + bias_ref[...]
    # fused BN-statistics epilogue: per-tile sum / sum-of-squares of the
    # PRE-bias values (padding rows contribute exact zeros).
    s1 = jnp.sum(raw, axis=0, keepdims=True)
    s2 = jnp.sum(raw * raw, axis=0, keepdims=True)
    st_ref[...] = jnp.concatenate([s1, s2], axis=0)[None]


def _mm_bias_tanh_kernel(a_ref, b_ref, bias_ref, o_ref):
    # final2 convT fused with MembraneOutputLayer weighting + tanh (f32 MXU).
    o_ref[...] = jnp.tanh(
        jnp.dot(a_ref[...], b_ref[...], preferred_element_type=jnp.float32)
        + bias_ref[...]
    )


def _bn_spike_kernel(y_ref, s_ref, sh_ref, o_ref):
    # y: (1, T, bs, C) f32 — C on the 128-lane axis (lane-dense stores).
    z = y_ref[...] * s_ref[...] + sh_ref[...]
    _, T_, bs, C = z.shape
    u = jnp.zeros((1, bs, C), jnp.float32)
    o = jnp.zeros((1, bs, C), jnp.float32)
    for t in range(T_):                      # LIF / HH-style update over time
        u = TAU * u * (1.0 - o) + z[:, t]
        o = (u > VTH).astype(jnp.float32)
        o_ref[:, t, :, :] = o.astype(o_ref.dtype)


def _linear_chain_kernel(*refs, alpha):
    """Fused chain of (tdLinear + tdBatchNorm + spike) layers on tiny matrices.

    refs = [x, (wT, b, gamma, beta) * n_layers, out]; x: (B, T, C0).
    """
    x_ref, o_ref = refs[0], refs[-1]
    n_layers = (len(refs) - 2) // 4
    h = x_ref[...].astype(jnp.float32)
    B_, T_ = h.shape[0], h.shape[1]
    for li in range(n_layers):
        wT = refs[1 + 4 * li][...]           # (Cin, Cout)
        b = refs[2 + 4 * li][...]            # (1, Cout)
        g = refs[3 + 4 * li][...]
        be = refs[4 + 4 * li][...]
        Cin, Cout = wT.shape
        y = jnp.dot(h.reshape(B_ * T_, Cin), wT,
                    preferred_element_type=jnp.float32) + b
        mean = jnp.mean(y, axis=0, keepdims=True)            # training-mode BN
        var = jnp.mean((y - mean) ** 2, axis=0, keepdims=True)
        s = alpha * VTH * g / jnp.sqrt(var + BN_EPS)
        z = ((y - mean) * s + be).reshape(B_, T_, Cout)
        u = jnp.zeros((B_, Cout), jnp.float32)
        o = jnp.zeros((B_, Cout), jnp.float32)
        outs = []
        for t in range(T_):
            u = TAU * u * (1.0 - o) + z[:, t, :]
            o = (u > VTH).astype(jnp.float32)
            outs.append(o)
        h = jnp.stack(outs, axis=1)          # (B, T, Cout)
    o_ref[...] = h


# ----------------------------------------------------------------------------
# Pallas wrappers
# ----------------------------------------------------------------------------
def pallas_matmul_bias_stats(a, bw, bias):
    """y = a@bw + bias (+ fused per-channel sum/sumsq of a@bw).

    a:(M,K), bw:(K,N) are cast to bf16 (spike inputs are exact); bias f32.
    Returns y:(M,N) f32 and stats:(G,2,N) partial sums per M-tile.
    """
    M, K = a.shape
    N = bw.shape[1]
    tm, Mp = _pick_tile(M)
    a = a.astype(jnp.bfloat16)
    bw = bw.astype(jnp.bfloat16)
    if Mp != M:
        a = jnp.pad(a, ((0, Mp - M), (0, 0)))
    G = Mp // tm
    y, st = pl.pallas_call(
        _mm_bias_stats_kernel,
        out_shape=(jax.ShapeDtypeStruct((Mp, N), jnp.float32),
                   jax.ShapeDtypeStruct((G, 2, N), jnp.float32)),
        grid=(G,),
        in_specs=[
            pl.BlockSpec((tm, K), lambda i: (i, 0)),
            pl.BlockSpec((K, N), lambda i: (0, 0)),
            pl.BlockSpec((1, N), lambda i: (0, 0)),
        ],
        out_specs=(pl.BlockSpec((tm, N), lambda i: (i, 0)),
                   pl.BlockSpec((1, 2, N), lambda i: (i, 0, 0))),
        compiler_params=pltpu.CompilerParams(
            dimension_semantics=("parallel",),
            vmem_limit_bytes=48 * 1024 * 1024),
    )(a, bw, bias.reshape(1, N).astype(jnp.float32))
    if Mp != M:
        y = y[:M]
    return y, st


def pallas_matmul_bias_tanh(a, bw, bias):
    """tanh(a @ bw + bias) in f32 (used for the fused membrane output)."""
    M, K = a.shape
    N = bw.shape[1]
    tm, Mp = _pick_tile(M)
    a = a.astype(jnp.float32)
    if Mp != M:
        a = jnp.pad(a, ((0, Mp - M), (0, 0)))
    out = pl.pallas_call(
        _mm_bias_tanh_kernel,
        out_shape=jax.ShapeDtypeStruct((Mp, N), jnp.float32),
        grid=(Mp // tm,),
        in_specs=[
            pl.BlockSpec((tm, K), lambda i: (i, 0)),
            pl.BlockSpec((K, N), lambda i: (0, 0)),
            pl.BlockSpec((1, N), lambda i: (0, 0)),
        ],
        out_specs=pl.BlockSpec((tm, N), lambda i: (i, 0)),
        compiler_params=pltpu.CompilerParams(dimension_semantics=("parallel",)),
    )(a, bw.astype(jnp.float32), bias.reshape(1, N).astype(jnp.float32))
    return out[:M] if Mp != M else out


def pallas_bn_spike(y4, scale, shift):
    """Fused tdBatchNorm affine + spiking neuron.

    y4: (N, T, HW, C) f32 (C lane-dense) -> spikes (N, T, HW, C) bf16.
    """
    N_, T_, HW, C = y4.shape
    bs = _pick_bs(HW)
    return pl.pallas_call(
        _bn_spike_kernel,
        out_shape=jax.ShapeDtypeStruct((N_, T_, HW, C), SPIKE_DTYPE),
        grid=(N_, HW // bs),
        in_specs=[
            pl.BlockSpec((1, T_, bs, C), lambda n, j: (n, 0, j, 0)),
            pl.BlockSpec((1, 1, 1, C), lambda n, j: (0, 0, 0, 0)),
            pl.BlockSpec((1, 1, 1, C), lambda n, j: (0, 0, 0, 0)),
        ],
        out_specs=pl.BlockSpec((1, T_, bs, C), lambda n, j: (n, 0, j, 0)),
        compiler_params=pltpu.CompilerParams(
            dimension_semantics=("parallel", "parallel")),
    )(y4, scale.reshape(1, 1, 1, C).astype(jnp.float32),
      shift.reshape(1, 1, 1, C).astype(jnp.float32))


def fused_linear_chain(x, layer_params, alpha):
    """Chain of tdLinear+tdBatchNorm+spike layers as ONE pallas_call.

    x: (B, T, C0) -> (B, T, Cout_last) f32.  Everything fits in VMEM.
    """
    B_, T_, _ = x.shape
    args = [x]
    for p in layer_params:
        cout = p["w"].shape[0]
        args += [p["w"].T.astype(jnp.float32),
                 p["b"].reshape(1, cout).astype(jnp.float32),
                 p["gamma"].reshape(1, cout).astype(jnp.float32),
                 p["beta"].reshape(1, cout).astype(jnp.float32)]
    cout_last = layer_params[-1]["w"].shape[0]
    kern = functools.partial(_linear_chain_kernel, alpha=alpha)
    return pl.pallas_call(
        kern,
        out_shape=jax.ShapeDtypeStruct((B_, T_, cout_last), jnp.float32),
    )(*args)


# ----------------------------------------------------------------------------
# BN statistics combine (from fused matmul epilogue)
# ----------------------------------------------------------------------------
def _bn_scale_shift_from_stats(st, bias, gamma, beta, rows, alpha):
    # st: (G, 2, N) partial sums of raw = A@B (pre-bias).
    sum_raw = jnp.sum(st[:, 0, :], axis=0)
    sq_raw = jnp.sum(st[:, 1, :], axis=0)
    mean_raw = sum_raw / rows
    var = jnp.maximum(sq_raw / rows - mean_raw * mean_raw, 0.0)  # unbiased=False
    mean = mean_raw + bias                    # var(raw + bias) == var(raw)
    s = alpha * VTH * gamma / jnp.sqrt(var + BN_EPS)
    sh = beta - mean * s
    return s, sh


def _mm_bn_spike(A, Bm, p, shape_ntHoWo, alpha=1.0):
    N_, T_, Ho, Wo = shape_ntHoWo
    Cout = Bm.shape[1]
    y, st = pallas_matmul_bias_stats(A, Bm, p["b"])
    s, sh = _bn_scale_shift_from_stats(st, p["b"], p["gamma"], p["beta"],
                                       A.shape[0], alpha)
    y4 = y.reshape(N_, T_, Ho * Wo, Cout)     # free reshape, no HBM transpose
    spk = pallas_bn_spike(y4, s, sh)
    return spk.reshape(N_, T_, Ho, Wo, Cout)


# ----------------------------------------------------------------------------
# Layer wrappers (im2col in plain JAX, matmul/BN/spike in Pallas)
# ----------------------------------------------------------------------------
def td_conv(x, p, stride, padding):
    """tdConv + tdBatchNorm + spike. x:(N,T,H,W,Cin) -> (N,T,Ho,Wo,Cout)."""
    N_, T_, H, W, Cin = x.shape
    w = p["w"]                                # (Cout, Cin, kh, kw)
    Cout, _, kh, kw = w.shape
    Ho = (H + 2 * padding - kh) // stride + 1
    Wo = (W + 2 * padding - kw) // stride + 1
    xp = jnp.pad(x, ((0, 0), (0, 0), (padding, padding), (padding, padding), (0, 0)))
    cols = []
    for di in range(kh):
        for dj in range(kw):
            cols.append(xp[:, :, di:di + stride * (Ho - 1) + 1:stride,
                           dj:dj + stride * (Wo - 1) + 1:stride, :])
    patches = jnp.stack(cols, axis=-1)        # (N,T,Ho,Wo,Cin,kh*kw)
    A = patches.reshape(N_ * T_ * Ho * Wo, Cin * kh * kw)
    Bm = w.reshape(Cout, Cin * kh * kw).T
    return _mm_bn_spike(A, Bm, p, (N_, T_, Ho, Wo), alpha=1.0)


def _convT_im2col(x, w, stride, padding, output_padding):
    """Transposed conv as dilation + pad + correlation with flipped weights."""
    N_, T_, H, W, Cin = x.shape
    _, Cout, kh, kw = w.shape
    if stride > 1:
        Hd = (H - 1) * stride + 1
        Wd = (W - 1) * stride + 1
        xd = jnp.zeros((N_, T_, Hd, Wd, Cin), x.dtype)
        xd = xd.at[:, :, ::stride, ::stride, :].set(x)
    else:
        Hd, Wd, xd = H, W, x
    pb_h = kh - 1 - padding
    pa_h = kh - 1 - padding + output_padding
    pb_w = kw - 1 - padding
    pa_w = kw - 1 - padding + output_padding
    xp = jnp.pad(xd, ((0, 0), (0, 0), (pb_h, pa_h), (pb_w, pa_w), (0, 0)))
    Ho = Hd + pb_h + pa_h - kh + 1
    Wo = Wd + pb_w + pa_w - kw + 1
    w_conv = jnp.transpose(w, (1, 0, 2, 3))[:, :, ::-1, ::-1]   # (Cout,Cin,kh,kw)
    cols = []
    for di in range(kh):
        for dj in range(kw):
            cols.append(xp[:, :, di:di + Ho, dj:dj + Wo, :])
    patches = jnp.stack(cols, axis=-1)
    A = patches.reshape(N_ * T_ * Ho * Wo, Cin * kh * kw)
    Bm = w_conv.reshape(Cout, Cin * kh * kw).T
    return A, Bm, Ho, Wo


def td_convtranspose(x, p, stride, padding, output_padding):
    """tdConvTranspose + tdBatchNorm + spike."""
    N_, T_ = x.shape[0], x.shape[1]
    A, Bm, Ho, Wo = _convT_im2col(x, p["w"], stride, padding, output_padding)
    return _mm_bn_spike(A, Bm, p, (N_, T_, Ho, Wo), alpha=1.0)


def convT_membrane_tanh(xw, p, coef_sum, padding=1):
    """final2 tdConvTranspose (no BN/spike) fused with MembraneOutputLayer+tanh.

    xw: (N, H, W, Cin) — spikes already time-weighted by 0.8^(T-1-t); the conv
    is linear per time step, so this is exactly tanh(sum_t coef_t * final2(x_t)).
    """
    N_, H, W, Cin = xw.shape
    w = p["w"]                                 # (Cin, Cout, kh, kw)
    _, Cout, kh, kw = w.shape
    pb = kh - 1 - padding
    xp = jnp.pad(xw, ((0, 0), (pb, pb), (pb, pb), (0, 0)))
    Ho = H + 2 * pb - kh + 1
    Wo = W + 2 * pb - kw + 1
    w_conv = jnp.transpose(w, (1, 0, 2, 3))[:, :, ::-1, ::-1]
    cols = []
    for di in range(kh):
        for dj in range(kw):
            cols.append(xp[:, di:di + Ho, dj:dj + Wo, :])
    patches = jnp.stack(cols, axis=-1)
    A = patches.reshape(N_ * Ho * Wo, Cin * kh * kw)
    Bm = w_conv.reshape(Cout, Cin * kh * kw).T
    y = pallas_matmul_bias_tanh(A, Bm, p["b"] * coef_sum)       # (N*H*W, Cout)
    return y.reshape(N_, Ho, Wo, Cout).transpose(0, 3, 1, 2)    # (N, Cout, H, W)


# ----------------------------------------------------------------------------
# Prior / Posterior Bernoulli STBP (glue around the fused MLP kernel)
# ----------------------------------------------------------------------------
def posterior_forward(x_btc, layer_params, cfg, key):
    B_, T_, C = x_btc.shape
    k = cfg["k"]
    z_t_minus = jnp.zeros((B_, 1, C), jnp.float32)
    rand_idx = []
    for t in range(T_ - 1):
        inputs = jnp.concatenate([x_btc[:, : t + 1, :], z_t_minus], axis=-1)
        outputs = fused_linear_chain(inputs, layer_params, alpha=2.0)  # (B,t+1,C*k)
        q_z_t = outputs[:, -1, :].reshape(B_, C, k)
        key, sub = jax.random.split(key)
        idx = jax.random.randint(sub, (B_, C), 0, k)
        rand_idx.append(idx)
        z_t = jnp.take_along_axis(q_z_t, idx[..., None], axis=2)      # (B,C,1)
        z_t_minus = jnp.concatenate(
            [z_t_minus, jnp.transpose(z_t, (0, 2, 1))], axis=1)
    inputs = jnp.concatenate([x_btc, z_t_minus], axis=-1)             # (B,T,2C)
    q_z = fused_linear_chain(inputs, layer_params, alpha=2.0)         # (B,T,C*k)
    sampled = []
    for t in range(T_):
        if t == T_ - 1:
            key, sub = jax.random.split(key)
            idx = jax.random.randint(sub, (B_, C), 0, k)
        else:
            idx = rand_idx[t]
        q_t = q_z[:, t, :].reshape(B_, C, k)
        sampled.append(jnp.take_along_axis(q_t, idx[..., None], axis=2))
    sampled_z = jnp.concatenate(sampled, axis=-1)                     # (B,C,T)
    q_z_out = q_z.reshape(B_, T_, C, k).transpose(0, 2, 3, 1)         # (B,C,k,T)
    return sampled_z, q_z_out


def prior_forward(sampled_z_bct, layer_params, cfg):
    B_, C, T_ = sampled_z_bct.shape
    z_btc = jnp.transpose(sampled_z_bct, (0, 2, 1))
    z0 = jnp.zeros((B_, 1, C), jnp.float32)
    inputs = jnp.concatenate([z0, z_btc[:, : T_ - 1, :]], axis=1)     # (B,T,C)
    p_z = fused_linear_chain(inputs, layer_params, alpha=2.0)         # (B,T,C*k)
    return p_z.reshape(B_, T_, C, cfg["k"]).transpose(0, 2, 3, 1)     # (B,C,k,T)


# ----------------------------------------------------------------------------
# Full FSVAE forward
# ----------------------------------------------------------------------------
def decode(sampled_z_bct, params, cfg):
    B_, _, T_ = sampled_z_bct.shape
    hd_last = 256
    z_btc = jnp.transpose(sampled_z_bct, (0, 2, 1))                   # (B,T,C)
    result = fused_linear_chain(z_btc, [params["decoder_input"]], alpha=1.0)
    # PyTorch: (B, 1024, T).view(B, 256, 2, 2, T)  ->  NTHWC here
    x = result.reshape(B_, T_, hd_last, 2, 2).transpose(0, 1, 3, 4, 2)
    for p in params["decoder"]:
        x = td_convtranspose(x, p, stride=2, padding=1, output_padding=1)
    x = td_convtranspose(x, params["final1"], stride=2, padding=1, output_padding=1)
    # MembraneOutputLayer: sum_t 0.8^(T-1-t) * final2(x_t) + bias, then tanh.
    # final2 has no BN/spike -> linear, so weight the spikes first.
    coef = jnp.power(0.8, jnp.arange(T_ - 1, -1, -1).astype(jnp.float32))
    xw = jnp.einsum("nthwc,t->nhwc", x.astype(jnp.float32), coef)
    out = convT_membrane_tanh(xw, params["final2"], coef_sum=jnp.sum(coef),
                              padding=1)
    return out                                                        # (N,Cin,H,W)


def fsvae_forward(x_nchwt, params, cfg, key, scheduled=False):
    del scheduled  # scheduled sampling path of the prior is not exercised here
    x = jnp.transpose(x_nchwt, (0, 4, 2, 3, 1)).astype(jnp.float32)   # NTHWC
    for p in params["encoder"]:                       # 4 stride-2 tdConv blocks
        x = td_conv(x, p, stride=2, padding=1)
    N_, T_ = x.shape[0], x.shape[1]
    # torch.flatten(NCHWT, 1, 3): features ordered (c, h, w)
    x_flat = jnp.transpose(x, (0, 1, 4, 2, 3)).reshape(N_, T_, -1)    # (N,T,C*H*W)
    latent_x = fused_linear_chain(x_flat, [params["before_latent"]], alpha=1.0)
    sampled_z, q_z = posterior_forward(latent_x, params["posterior"], cfg, key)
    p_z = prior_forward(sampled_z, params["prior"], cfg)
    x_recon = decode(sampled_z, params, cfg)
    return x_recon, q_z, p_z, sampled_z


# ----------------------------------------------------------------------------
# Deterministic parameter initialization (shapes from FSVAE.__init__)
# ----------------------------------------------------------------------------
def _dense_params(key, cout, cin):
    kw, kb = jax.random.split(key)
    w = jax.random.normal(kw, (cout, cin), jnp.float32) / jnp.sqrt(cin)
    b = jax.random.uniform(kb, (cout,), minval=-0.05, maxval=0.05)
    return {"w": w, "b": b, "gamma": jnp.ones((cout,)), "beta": jnp.zeros((cout,))}


def _conv_params(key, cout, cin, k=3):
    kw, kb = jax.random.split(key)
    w = jax.random.normal(kw, (cout, cin, k, k), jnp.float32) / jnp.sqrt(cin * k * k)
    b = jax.random.uniform(kb, (cout,), minval=-0.05, maxval=0.05)
    return {"w": w, "b": b, "gamma": jnp.ones((cout,)), "beta": jnp.zeros((cout,))}


def _convT_params(key, cin, cout, k=3):
    kw, kb = jax.random.split(key)
    w = jax.random.normal(kw, (cin, cout, k, k), jnp.float32) / jnp.sqrt(cin * k * k)
    b = jax.random.uniform(kb, (cout,), minval=-0.05, maxval=0.05)
    return {"w": w, "b": b, "gamma": jnp.ones((cout,)), "beta": jnp.zeros((cout,))}


def init_params(key, cfg):
    hidden = [32, 64, 128, 256]
    keys = iter(jax.random.split(key, 32))
    params = {}
    enc, cin = [], cfg["in_channels"]
    for h in hidden:
        enc.append(_conv_params(next(keys), h, cin))
        cin = h
    params["encoder"] = enc
    C, k = cfg["latent_dim"], cfg["k"]
    params["before_latent"] = _dense_params(next(keys), C, hidden[-1] * 4)
    params["posterior"] = [
        _dense_params(next(keys), C * 2, C * 2),
        _dense_params(next(keys), C * 4, C * 2),
        _dense_params(next(keys), C * k, C * 4),
    ]
    params["prior"] = [
        _dense_params(next(keys), C * 2, C),
        _dense_params(next(keys), C * 4, C * 2),
        _dense_params(next(keys), C * k, C * 4),
    ]
    params["decoder_input"] = _dense_params(next(keys), hidden[-1] * 4, C)
    rev = hidden[::-1]  # [256, 128, 64, 32]
    params["decoder"] = [
        _convT_params(next(keys), rev[i], rev[i + 1]) for i in range(len(rev) - 1)
    ]
    params["final1"] = _convT_params(next(keys), rev[-1], rev[-1])
    params["final2"] = _convT_params(next(keys), rev[-1], cfg["in_channels"])
    return params


if __name__ == "__main__":
    cfg = dict(in_channels=2, latent_dim=16, n_steps=4, k=2)
    N, C, H, W, T = 2, cfg["in_channels"], 32, 32, cfg["n_steps"]

    key = jax.random.PRNGKey(0)
    kx, kp, ks = jax.random.split(key, 3)
    # spiking input: (N, C, H, W, T)  (PyTorch NCHW + trailing time axis)
    x = (jax.random.uniform(kx, (N, C, H, W, T)) < 0.5).astype(jnp.float32)
    params = init_params(kp, cfg)

    x_recon, q_z, p_z, sampled_z = fsvae_forward(x, params, cfg, ks)
    (x_recon, q_z, p_z, sampled_z) = jax.block_until_ready(
        (x_recon, q_z, p_z, sampled_z)
    )

    assert x_recon.shape == (N, C, H, W)
    assert q_z.shape == (N, cfg["latent_dim"], cfg["k"], T)
    assert p_z.shape == (N, cfg["latent_dim"], cfg["k"], T)
    assert sampled_z.shape == (N, cfg["latent_dim"], T)
    print("KERNEL_OK")
</pallas_src>

<mosaic_0001>
module attributes {stable_mosaic.version = 11 : i64} {
  func.func @_mm_bias_stats_kernel(%arg0: i32, %arg1: memref<512x18xbf16, #tpu.memory_space<vmem>>, %arg2: memref<18x32xbf16, #tpu.memory_space<vmem>>, %arg3: memref<1x32xf32, #tpu.memory_space<vmem>>, %arg4: memref<512x32xf32, #tpu.memory_space<vmem>>, %arg5: memref<1x2x32xf32, #tpu.memory_space<vmem>>) attributes {dimension_semantics = [#tpu.dimension_semantics<parallel>], iteration_bounds = array<i64: 4>, scalar_prefetch = 0 : i64, scratch_operands = 0 : i64, tpu.core_type = #tpu.core_type<tc>, window_params = [{transform_indices = @transform_0, window_bounds = array<i64: 512, 18>}, {pipeline_mode = #tpu.pipeline_mode<synchronous>, transform_indices = @transform_1, window_bounds = array<i64: 18, 32>}, {pipeline_mode = #tpu.pipeline_mode<synchronous>, transform_indices = @transform_2, window_bounds = array<i64: 1, 32>}, {transform_indices = @transform_3, window_bounds = array<i64: 512, 32>}, {transform_indices = @transform_4, window_bounds = array<i64: 1, 2, 32>}]} {
    %c0 = arith.constant 0 : index
    %c0_0 = arith.constant 0 : index
    %0 = vector.load %arg1[%c0, %c0_0] : memref<512x18xbf16, #tpu.memory_space<vmem>>, vector<512x18xbf16>
    %c0_1 = arith.constant 0 : index
    %c0_2 = arith.constant 0 : index
    %1 = vector.load %arg2[%c0_1, %c0_2] : memref<18x32xbf16, #tpu.memory_space<vmem>>, vector<18x32xbf16>
    %cst = arith.constant dense<0.000000e+00> : vector<512x32xf32>
    %2 = tpu.matmul %0, %1, %cst {dimension_numbers = #tpu.dot_dimension_numbers<[1], [0], [0], [1], [0, 0, 1, 1], [], []>} : vector<512x18xbf16>, vector<18x32xbf16>, vector<512x32xf32> -> vector<512x32xf32>
    %c0_3 = arith.constant 0 : index
    %c0_4 = arith.constant 0 : index
    %3 = vector.load %arg3[%c0_3, %c0_4] : memref<1x32xf32, #tpu.memory_space<vmem>>, vector<1x32xf32>
    %4 = vector.broadcast %3 : vector<1x32xf32> to vector<512x32xf32>
    %5 = arith.addf %2, %4 : vector<512x32xf32>
    %c0_5 = arith.constant 0 : index
    %c0_6 = arith.constant 0 : index
    %6 = vector.load %arg4[%c0_5, %c0_6] : memref<512x32xf32, #tpu.memory_space<vmem>>, vector<512x32xf32>
    tpu.vector_store %arg4[%c0_5, %c0_6], %5 {strides = array<i32>} : memref<512x32xf32, #tpu.memory_space<vmem>>, vector<512x32xf32>,
    %cst_7 = arith.constant dense<0.000000e+00> : vector<32xf32>
    %7 = vector.multi_reduction <add>, %2, %cst_7 [0] : vector<512x32xf32> to vector<32xf32>
    %8 = vector.shape_cast %7 : vector<32xf32> to vector<1x32xf32>
    %9 = arith.mulf %2, %2 : vector<512x32xf32>
    %cst_8 = arith.constant dense<0.000000e+00> : vector<32xf32>
    %10 = vector.multi_reduction <add>, %9, %cst_8 [0] : vector<512x32xf32> to vector<32xf32>
    %11 = vector.shape_cast %10 : vector<32xf32> to vector<1x32xf32>
    %12 = tpu.concatenate %8, %11 in 0 : vector<1x32xf32>, vector<1x32xf32> -> vector<2x32xf32>
    %13 = vector.shape_cast %12 : vector<2x32xf32> to vector<1x2x32xf32>
    %c0_9 = arith.constant 0 : index
    %c0_10 = arith.constant 0 : index
    %c0_11 = arith.constant 0 : index
    %14 = vector.load %arg5[%c0_9, %c0_10, %c0_11] : memref<1x2x32xf32, #tpu.memory_space<vmem>>, vector<1x2x32xf32>
    tpu.vector_store %arg5[%c0_9, %c0_10, %c0_11], %13 {strides = array<i32>} : memref<1x2x32xf32, #tpu.memory_space<vmem>>, vector<1x2x32xf32>,
    return
  }
  func.func @transform_0(%arg0: i32) -> (i32, i32) {
    %c0_i32 = arith.constant 0 : i32
    %c0_i32_0 = arith.constant 0 : i32
    return %arg0, %c0_i32 : i32, i32
  }
  func.func @transform_1(%arg0: i32) -> (i32, i32) {
    %c0_i32 = arith.constant 0 : i32
    %c0_i32_0 = arith.constant 0 : i32
    %c0_i32_1 = arith.constant 0 : i32
    return %c0_i32, %c0_i32_0 : i32, i32
  }
  func.func @transform_2(%arg0: i32) -> (i32, i32) {
    %c0_i32 = arith.constant 0 : i32
    %c0_i32_0 = arith.constant 0 : i32
    %c0_i32_1 = arith.constant 0 : i32
    return %c0_i32, %c0_i32_0 : i32, i32
  }
  func.func @transform_3(%arg0: i32) -> (i32, i32) {
    %c0_i32 = arith.constant 0 : i32
    %c0_i32_0 = arith.constant 0 : i32
    return %arg0, %c0_i32 : i32, i32
  }
  func.func @transform_4(%arg0: i32) -> (i32, i32, i32) {
    %c0_i32 = arith.constant 0 : i32
    %c0_i32_0 = arith.constant 0 : i32
    %c0_i32_1 = arith.constant 0 : i32
    return %arg0, %c0_i32, %c0_i32_0 : i32, i32, i32
  }
}

</mosaic_0001>

<llo_original>
// kernel: tpu_custom_call.1
$region0: #{tpu_custom_call.1}
  #allocation0 [shape = 'u32[]', space=smem, size = 0x4, offset = 0x4, fixed_abs, tag = 'smem constant byte address 0x4 - core index']
  #allocation1 [shape = 'u32[144,128]{1,0:T(1,128)}', space=vmem, size = 0x12000, scoped, tag = 'internal scratch']
  %s0 = inlined_call_operand.vmem [shape: bf16[2048,18], index: 0, kind: input, shape index: {}]
  %s1 = inlined_call_operand.vmem [shape: bf16[18,32], index: 1, kind: input, shape index: {}]
  %s2 = inlined_call_operand.vmem [shape: f32[1,32], index: 2, kind: input, shape index: {}]
  %s3 = inlined_call_operand.vmem [shape: f32[2048,32], index: 3, kind: output, shape index: {0}]
  %s4 = inlined_call_operand.hbm [shape: f32[4,2,32], index: 4, kind: output, shape index: {1}]
  %5 = xla_tuple %s3, %s4
  %s6 = sld [smem:[#allocation0]]
  $region53: #{tpu_custom_call.1} parent=0
    _
  %s8 = ssub.s32 1, %s6
  %s9 = scalar_select 0, %s8, %s6
  $region1: #{tpu_custom_call.1} parent=0
    #allocation2 [shape = 'u8[2048]{0}', space=vmem, size = 0x800, scoped, tag = 'output window, operand 1']
    #allocation3 [shape = 's32[2]{0}', space=sflag, size = 0x8, scoped, tag = 'scoped memory for tpu_custom_call.1']
    %10 = vsyncpa [#allocation3], 0
    %s11 = scalar_lea.sflag [#allocation3], 1
    %12 = vsyncpa %s11, 0
    loop: start=0, step=1, limit=6
    $region2: #{tpu_custom_call.1} parent=1 // loop_pre_header
      _
    $region3: #{tpu_custom_call.1} parent=1 // loop_header
      %s14 = sphi 0, %s18
      %p15 = scmp.ge.s32.totalorder %s14, 6
      %s24 = sphi 0, %s26
      %s27 = sphi 0, %s24
      %s28 = sphi 0, %s27
      %s44 = sphi 0, %s28
      %s48 = sphi 0, %s48
      %s50 = sphi 0, %s48
      %s51 = sphi 0, %s50
      %s65 = sphi 0, %s51
      %s69 = sphi 0, %s69
      %s71 = sphi 0, %s69
      %s72 = sphi 0, %s71
      %s86 = sphi 0, %s72
      %s92 = sphi 0, %s94
      %s95 = sphi 0, %s92
      %s96 = sphi 0, %s95
      %s112 = sphi 0, %s96
      %s118 = sphi 0, %s120
      %s121 = sphi 0, %s118
      %s122 = sphi 0, %s121
      %s138 = sphi 0, %s122
    $region4: #{tpu_custom_call.1} parent=1 // loop_header_branch
      %17 = sbr.rel (%p15) target = $region8
    $region5: #{tpu_custom_call.1} parent=1 // loop_body
      %s19 = ssub.s32 %s14, 1
      %s20 = ssub.s32 %s14, 2
      %s21 = sadd.s32 %s14, 1
      %s22 = ssub.s32 %s14, %s21
      %p23 = scmp.eq.s32.totalorder %s22, 0
      %s25 = sadd.s32 %s24, 1
      %s26 = scalar_select %p23, %s24, %s25
      %p29 = pneg %p23
      %p30 = scmp.eq.s32.totalorder %s14, 3
      %p31 = por %p29, %p30
      %p32 = scmp.ne.s32.totalorder %s24, %s27
      %p33 = scmp.eq.s32.totalorder %s14, 0
      %p34 = por %p32, %p33
      %p35 = scmp.ne.s32.totalorder %s24, %s27
      %p36 = scmp.eq.s32.totalorder %s19, 3
      %p37 = por %p35, %p36
      %p38 = scmp.ne.s32.totalorder %s27, %s28
      %p39 = scmp.eq.s32.totalorder %s19, 0
      %p40 = por %p38, %p39
      %p41 = scmp.ne.s32.totalorder %s27, %s28
      %p42 = scmp.eq.s32.totalorder %s20, 3
      %p43 = por %p41, %p42
      %p45 = scmp.ne.s32.totalorder %s28, %s44
      %p46 = scmp.eq.s32.totalorder %s20, 0
      %p47 = por %p45, %p46
      %s49 = sadd.s32 %s48, 1
      %p52 = scmp.eq.s32.totalorder %s14, 3
      %p53 = scmp.ne.s32.totalorder %s48, %s50
      %p54 = scmp.eq.s32.totalorder %s14, 0
      %p55 = por %p53, %p54
      %p56 = scmp.ne.s32.totalorder %s48, %s50
      %p57 = scmp.eq.s32.totalorder %s19, 3
      %p58 = por %p56, %p57
      %p59 = scmp.ne.s32.totalorder %s50, %s51
      %p60 = scmp.eq.s32.totalorder %s19, 0
      %p61 = por %p59, %p60
      %p62 = scmp.ne.s32.totalorder %s50, %s51
      %p63 = scmp.eq.s32.totalorder %s20, 3
      %p64 = por %p62, %p63
      %p66 = scmp.ne.s32.totalorder %s51, %s65
      %p67 = scmp.eq.s32.totalorder %s20, 0
      %p68 = por %p66, %p67
      %s70 = sadd.s32 %s69, 1
      %p73 = scmp.eq.s32.totalorder %s14, 3
      %p74 = scmp.ne.s32.totalorder %s69, %s71
      %p75 = scmp.eq.s32.totalorder %s14, 0
      %p76 = por %p74, %p75
      %p77 = scmp.ne.s32.totalorder %s69, %s71
      %p78 = scmp.eq.s32.totalorder %s19, 3
      %p79 = por %p77, %p78
      %p80 = scmp.ne.s32.totalorder %s71, %s72
      %p81 = scmp.eq.s32.totalorder %s19, 0
      %p82 = por %p80, %p81
      %p83 = scmp.ne.s32.totalorder %s71, %s72
      %p84 = scmp.eq.s32.totalorder %s20, 3
      %p85 = por %p83, %p84
      %p87 = scmp.ne.s32.totalorder %s72, %s86
      %p88 = scmp.eq.s32.totalorder %s20, 0
      %p89 = por %p87, %p88
      %s90 = ssub.s32 %s14, %s21
      %p91 = scmp.eq.s32.totalorder %s90, 0
      %s93 = sadd.s32 %s92, 1
      %s94 = scalar_select %p91, %s92, %s93
      %p97 = pneg %p91
      %p98 = scmp.eq.s32.totalorder %s14, 3
      %p99 = por %p97, %p98
      %p100 = scmp.ne.s32.totalorder %s92, %s95
      %p101 = scmp.eq.s32.totalorder %s14, 0
      %p102 = por %p100, %p101
      %p103 = scmp.ne.s32.totalorder %s92, %s95
      %p104 = scmp.eq.s32.totalorder %s19, 3
      %p105 = por %p103, %p104
      %p106 = scmp.ne.s32.totalorder %s95, %s96
      %p107 = scmp.eq.s32.totalorder %s19, 0
      %p108 = por %p106, %p107
      %p109 = scmp.ne.s32.totalorder %s95, %s96
      %p110 = scmp.eq.s32.totalorder %s20, 3
      %p111 = por %p109, %p110
      %p113 = scmp.ne.s32.totalorder %s96, %s112
      %p114 = scmp.eq.s32.totalorder %s20, 0
      %p115 = por %p113, %p114
      %s116 = ssub.s32 %s14, %s21
      %p117 = scmp.eq.s32.totalorder %s116, 0
      %s119 = sadd.s32 %s118, 1
      %s120 = scalar_select %p117, %s118, %s119
      %p123 = pneg %p117
      %p124 = scmp.eq.s32.totalorder %s14, 3
      %p125 = por %p123, %p124
      %p126 = scmp.ne.s32.totalorder %s118, %s121
      %p127 = scmp.eq.s32.totalorder %s14, 0
      %p128 = por %p126, %p127
      %p129 = scmp.ne.s32.totalorder %s118, %s121
      %p130 = scmp.eq.s32.totalorder %s19, 3
      %p131 = por %p129, %p130
      %p132 = scmp.ne.s32.totalorder %s121, %s122
      %p133 = scmp.eq.s32.totalorder %s19, 0
      %p134 = por %p132, %p133
      %p135 = scmp.ne.s32.totalorder %s121, %s122
      %p136 = scmp.eq.s32.totalorder %s20, 3
      %p137 = por %p135, %p136
      %p139 = scmp.ne.s32.totalorder %s122, %s138
      %p140 = scmp.eq.s32.totalorder %s20, 0
      %p141 = por %p139, %p140
      %p142 = scmp.le.s32.totalorder 1, %s14
      %p143 = scmp.lt.s32.totalorder %s14, 5
      %p144 = pnand %p142, %p143
      %p145 = pneg %p144
      // Predicated region
      $region9: #{tpu_custom_call.1} parent=5 // pred_check
        _
      $region10: #{tpu_custom_call.1} parent=5 // pred_check_branch
        %147 = sbr.rel (%p144) target = $region12
      $region11: #{tpu_custom_call.1} parent=5 // pred_region
        %s148 = ssub.s32 %s14, 1
        // Predicated region
        $region13: #{tpu_custom_call.1} parent=11 // pred_check
          %p149 = pneg %p61
        $region14: #{tpu_custom_call.1} parent=11 // pred_check_branch
          %151 = sbr.rel (%p149) target = $region16
        $region15: #{tpu_custom_call.1} parent=11 // pred_region
          _
        $region16: #{tpu_custom_call.1} parent=11 // pred_fallthru
          _
        // Predicated region
        $region17: #{tpu_custom_call.1} parent=11 // pred_check
          %p152 = pneg %p82
        $region18: #{tpu_custom_call.1} parent=11 // pred_check_branch
          %154 = sbr.rel (%p152) target = $region20
        $region19: #{tpu_custom_call.1} parent=11 // pred_region
          _
        $region20: #{tpu_custom_call.1} parent=11 // pred_fallthru
          _
      $region12: #{tpu_custom_call.1} parent=5 // pred_fallthru
        _
      %p155 = scmp.lt.s32.totalorder %s14, 4
      // Predicated region
      $region21: #{tpu_custom_call.1} parent=5 // pred_check
        %p156 = pneg %p155
      $region22: #{tpu_custom_call.1} parent=5 // pred_check_branch
        %158 = sbr.rel (%p156) target = $region24
      $region23: #{tpu_custom_call.1} parent=5 // pred_region
        // Predicated region
        $region25: #{tpu_custom_call.1} parent=23 // pred_check
          %p159 = pneg %p34
        $region26: #{tpu_custom_call.1} parent=23 // pred_check_branch
          %161 = sbr.rel (%p159) target = $region28
        $region27: #{tpu_custom_call.1} parent=23 // pred_region
          %s162 = smul.u32 64, %s14
          %p163 = scmp.lt.s32.totalorder %s162, 255
          %s164 = scalar_select %p163, %s162, 255
          %s165 = smul.addr %s164, 4
          %s166 = scalar_lea.vmem %s0, %s165
          %s167 = smul.u32 64, %s14
        $region28: #{tpu_custom_call.1} parent=23 // pred_fallthru
          _
      $region24: #{tpu_custom_call.1} parent=5 // pred_fallthru
        _
      %p168 = scmp.le.s32.totalorder 1, %s14
      %p169 = scmp.lt.s32.totalorder %s14, 5
      %p170 = pnand %p168, %p169
      %p171 = pneg %p170
      // Predicated region
      $region29: #{tpu_custom_call.1} parent=5 // pred_check
        _
      $region30: #{tpu_custom_call.1} parent=5 // pred_check_branch
        %173 = sbr.rel (%p170) target = $region32
      $region31: #{tpu_custom_call.1} parent=5 // pred_region
        %s174 = ssub.s32 %s14, 1
        %s175 = smul.u32 64, %s19
        %p176 = scmp.lt.s32.totalorder %s175, 255
        %s177 = scalar_select %p176, %s175, 255
        %s178 = smul.addr %s177, 4
        %s179 = scalar_lea.vmem %s0, %s178
        %p180 = pneg %p40
        %p181 = pneg %p37
        %p182 = pneg %p61
        %p183 = pneg %p58
        %p184 = pneg %p82
        %p185 = pneg %p79
        %p186 = pneg %p108
        %p187 = pneg %p105
        %s188 = smul.u32 64, %s19
        %p189 = scmp.lt.s32.totalorder %s188, 255
        %s190 = scalar_select %p189, %s188, 255
        %s191 = smul.addr %s190, 8
        %s192 = scalar_lea.vmem %s3, %s191
        %p193 = pneg %p134
        %p194 = pneg %p131
        %s195 = sand.u32 %s121, 1
        %s196 = scalar_lea.sflag [#allocation3], %s195
        %s197 = sand.u32 %s121, 1
        %s198 = smul.addr %s197, 2
        %s199 = scalar_lea.vmem [#allocation2], %s198
        %s200 = smul.u32 64, %s19
        %p201 = scmp.lt.s32.totalorder %s200, 255
        %s202 = scalar_select %p201, %s200, 255
        %s203 = smul.addr %s202, 4
        %s204 = scalar_lea.vmem %s0, %s203
        %s205 = smul.u32 64, %s19
        %s206 = smul.u32 64, %s19
        %p207 = scmp.lt.s32.totalorder %s206, 255
        %s208 = scalar_select %p207, %s206, 255
        %s209 = smul.addr %s208, 8
        %s210 = scalar_lea.vmem %s3, %s209
        %s211 = smul.u32 64, %s19
        %v213 = vld [vmem:[%s204] sm:$0xf]
        %v214 = vld [vmem:[%s204 + $0x4] sm:$0xf]
        %v215 = vld [vmem:[%s204 + $0x8] sm:$0xf]
        %v216 = vld [vmem:[%s204 + $0xc] sm:$0xf]
        %v217 = vld [vmem:[%s204 + $0x10] sm:$0xf]
        %v218 = vld [vmem:[%s204 + $0x14] sm:$0xf]
        %v219 = vld [vmem:[%s204 + $0x18] sm:$0xf]
        %v220 = vld [vmem:[%s204 + $0x1c] sm:$0xf]
        %v221 = vld [vmem:[%s204 + $0x20] sm:$0xf]
        %v222 = vld [vmem:[%s204 + $0x24] sm:$0xf]
        %v223 = vld [vmem:[%s204 + $0x28] sm:$0xf]
        %v224 = vld [vmem:[%s204 + $0x2c] sm:$0xf]
        %v225 = vld [vmem:[%s204 + $0x30] sm:$0xf]
        %v226 = vld [vmem:[%s204 + $0x34] sm:$0xf]
        %v227 = vld [vmem:[%s204 + $0x38] sm:$0xf]
        %v228 = vld [vmem:[%s204 + $0x3c] sm:$0xf]
        %v229 = vld [vmem:[%s204 + $0x40] sm:$0xf]
        %v230 = vld [vmem:[%s204 + $0x44] sm:$0xf]
        %v231 = vld [vmem:[%s204 + $0x48] sm:$0xf]
        %v232 = vld [vmem:[%s204 + $0x4c] sm:$0xf]
        %v233 = vld [vmem:[%s204 + $0x50] sm:$0xf]
        %v234 = vld [vmem:[%s204 + $0x54] sm:$0xf]
        %v235 = vld [vmem:[%s204 + $0x58] sm:$0xf]
        %v236 = vld [vmem:[%s204 + $0x5c] sm:$0xf]
        %v237 = vld [vmem:[%s204 + $0x60] sm:$0xf]
        %v238 = vld [vmem:[%s204 + $0x64] sm:$0xf]
        %v239 = vld [vmem:[%s204 + $0x68] sm:$0xf]
        %v240 = vld [vmem:[%s204 + $0x6c] sm:$0xf]
        %v241 = vld [vmem:[%s204 + $0x70] sm:$0xf]
        %v242 = vld [vmem:[%s204 + $0x74] sm:$0xf]
        %v243 = vld [vmem:[%s204 + $0x78] sm:$0xf]
        %v244 = vld [vmem:[%s204 + $0x7c] sm:$0xf]
        %v245 = vld [vmem:[%s204 + $0x80] sm:$0xf]
        %v246 = vld [vmem:[%s204 + $0x84] sm:$0xf]
        %v247 = vld [vmem:[%s204 + $0x88] sm:$0xf]
        %v248 = vld [vmem:[%s204 + $0x8c] sm:$0xf]
        %v249 = vld [vmem:[%s204 + $0x90] sm:$0xf]
        %v250 = vld [vmem:[%s204 + $0x94] sm:$0xf]
        %v251 = vld [vmem:[%s204 + $0x98] sm:$0xf]
        %v252 = vld [vmem:[%s204 + $0x9c] sm:$0xf]
        %v253 = vld [vmem:[%s204 + $0xa0] sm:$0xf]
        %v254 = vld [vmem:[%s204 + $0xa4] sm:$0xf]
        %v255 = vld [vmem:[%s204 + $0xa8] sm:$0xf]
        %v256 = vld [vmem:[%s204 + $0xac] sm:$0xf]
        %v257 = vld [vmem:[%s204 + $0xb0] sm:$0xf]
        %v258 = vld [vmem:[%s204 + $0xb4] sm:$0xf]
        %v259 = vld [vmem:[%s204 + $0xb8] sm:$0xf]
        %v260 = vld [vmem:[%s204 + $0xbc] sm:$0xf]
        %v261 = vld [vmem:[%s204 + $0xc0] sm:$0xf]
        %v262 = vld [vmem:[%s204 + $0xc4] sm:$0xf]
        %v263 = vld [vmem:[%s204 + $0xc8] sm:$0xf]
        %v264 = vld [vmem:[%s204 + $0xcc] sm:$0xf]
        %v265 = vld [vmem:[%s204 + $0xd0] sm:$0xf]
        %v266 = vld [vmem:[%s204 + $0xd4] sm:$0xf]
        %v267 = vld [vmem:[%s204 + $0xd8] sm:$0xf]
        %v268 = vld [vmem:[%s204 + $0xdc] sm:$0xf]
        %v269 = vld [vmem:[%s204 + $0xe0] sm:$0xf]
        %v270 = vld [vmem:[%s204 + $0xe4] sm:$0xf]
        %v271 = vld [vmem:[%s204 + $0xe8] sm:$0xf]
        %v272 = vld [vmem:[%s204 + $0xec] sm:$0xf]
        %v273 = vld [vmem:[%s204 + $0xf0] sm:$0xf]
        %v274 = vld [vmem:[%s204 + $0xf4] sm:$0xf]
        %v275 = vld [vmem:[%s204 + $0xf8] sm:$0xf]
        %v276 = vld [vmem:[%s204 + $0xfc] sm:$0xf]
        %v277 = vld [vmem:[%s1] sm:$0xf]
        %v278 = vld [vmem:[%s1 + $0x4] sm:$0xf]
        %v279 = vld [vmem:[%s1 + $0x8] sm:$0x1]
        %v344 = vunpack.c.l.b16 %v213
        %v345 = vunpack.c.l.b16 %v214
        %v346 = vunpack.c.l.b16 %v215
        %v347 = vunpack.c.l.b16 %v216
        %v348 = vunpack.c.l.b16 %v217
        %v349 = vunpack.c.l.b16 %v218
        %v350 = vunpack.c.l.b16 %v219
        %v351 = vunpack.c.l.b16 %v220
        %v352 = vunpack.c.l.b16 %v221
        %v353 = vunpack.c.l.b16 %v222
        %v354 = vunpack.c.l.b16 %v223
        %v355 = vunpack.c.l.b16 %v224
        %v356 = vunpack.c.l.b16 %v225
        %v357 = vunpack.c.l.b16 %v226
        %v358 = vunpack.c.l.b16 %v227
        %v359 = vunpack.c.l.b16 %v228
        %v360 = vunpack.c.l.b16 %v229
        %v361 = vunpack.c.l.b16 %v230
        %v362 = vunpack.c.l.b16 %v231
        %v363 = vunpack.c.l.b16 %v232
        %v364 = vunpack.c.l.b16 %v233
        %v365 = vunpack.c.l.b16 %v234
        %v366 = vunpack.c.l.b16 %v235
        %v367 = vunpack.c.l.b16 %v236
        %v368 = vunpack.c.l.b16 %v237
        %v369 = vunpack.c.l.b16 %v238
        %v370 = vunpack.c.l.b16 %v239
        %v371 = vunpack.c.l.b16 %v240
        %v372 = vunpack.c.l.b16 %v241
        %v373 = vunpack.c.l.b16 %v242
        %v374 = vunpack.c.l.b16 %v243
        %v375 = vunpack.c.l.b16 %v244
        %v376 = vunpack.c.l.b16 %v245
        %v377 = vunpack.c.l.b16 %v246
        %v378 = vunpack.c.l.b16 %v247
        %v379 = vunpack.c.l.b16 %v248
        %v380 = vunpack.c.l.b16 %v249
        %v381 = vunpack.c.l.b16 %v250
        %v382 = vunpack.c.l.b16 %v251
        %v383 = vunpack.c.l.b16 %v252
        %v384 = vunpack.c.l.b16 %v253
        %v385 = vunpack.c.l.b16 %v254
        %v386 = vunpack.c.l.b16 %v255
        %v387 = vunpack.c.l.b16 %v256
        %v388 = vunpack.c.l.b16 %v257
        %v389 = vunpack.c.l.b16 %v258
        %v390 = vunpack.c.l.b16 %v259
        %v391 = vunpack.c.l.b16 %v260
        %v392 = vunpack.c.l.b16 %v261
        %v393 = vunpack.c.l.b16 %v262
        %v394 = vunpack.c.l.b16 %v263
        %v395 = vunpack.c.l.b16 %v264
        %v396 = vunpack.c.l.b16 %v265
        %v397 = vunpack.c.l.b16 %v266
        %v398 = vunpack.c.l.b16 %v267
        %v399 = vunpack.c.l.b16 %v268
        %v400 = vunpack.c.l.b16 %v269
        %v401 = vunpack.c.l.b16 %v270
        %v402 = vunpack.c.l.b16 %v271
        %v403 = vunpack.c.l.b16 %v272
        %v404 = vunpack.c.l.b16 %v273
        %v405 = vunpack.c.l.b16 %v274
        %v406 = vunpack.c.l.b16 %v275
        %v407 = vunpack.c.l.b16 %v276
        %v408 = vpack.c.b16 %v345, %v344
        %v409 = vpack.c.b16 %v347, %v346
        %v410 = vpack.c.b16 %v349, %v348
        %v411 = vpack.c.b16 %v351, %v350
        %v412 = vpack.c.b16 %v353, %v352
        %v413 = vpack.c.b16 %v355, %v354
        %v414 = vpack.c.b16 %v357, %v356
        %v415 = vpack.c.b16 %v359, %v358
        %v416 = vpack.c.b16 %v361, %v360
        %v417 = vpack.c.b16 %v363, %v362
        %v418 = vpack.c.b16 %v365, %v364
        %v419 = vpack.c.b16 %v367, %v366
        %v420 = vpack.c.b16 %v369, %v368
        %v421 = vpack.c.b16 %v371, %v370
        %v422 = vpack.c.b16 %v373, %v372
        %v423 = vpack.c.b16 %v375, %v374
        %v424 = vpack.c.b16 %v377, %v376
        %v425 = vpack.c.b16 %v379, %v378
        %v426 = vpack.c.b16 %v381, %v380
        %v427 = vpack.c.b16 %v383, %v382
        %v428 = vpack.c.b16 %v385, %v384
        %v429 = vpack.c.b16 %v387, %v386
        %v430 = vpack.c.b16 %v389, %v388
        %v431 = vpack.c.b16 %v391, %v390
        %v432 = vpack.c.b16 %v393, %v392
        %v433 = vpack.c.b16 %v395, %v394
        %v434 = vpack.c.b16 %v397, %v396
        %v435 = vpack.c.b16 %v399, %v398
        %v436 = vpack.c.b16 %v401, %v400
        %v437 = vpack.c.b16 %v403, %v402
        %v438 = vpack.c.b16 %v405, %v404
        %v439 = vpack.c.b16 %v407, %v406
        %v443 = vunpack.c.l.b16 %v277
        %v444 = vunpack.c.l.b16 %v278
        %v445 = vunpack.c.l.b16 %v279
        %v446 = vpack.c.b16 %v444, %v443
        %v447 = vpack.c.b16 %v445, %v445
        %vm449 = vcmask 146432
        %v451 = vsel %vm449, %v408, 0
        %v454 = vsel %vm449, %v409, 0
        %v457 = vsel %vm449, %v410, 0
        %v460 = vsel %vm449, %v411, 0
        %v463 = vsel %vm449, %v412, 0
        %v466 = vsel %vm449, %v413, 0
        %v469 = vsel %vm449, %v414, 0
        %v472 = vsel %vm449, %v415, 0
        %v475 = vsel %vm449, %v416, 0
        %v478 = vsel %vm449, %v417, 0
        %v481 = vsel %vm449, %v418, 0
        %v484 = vsel %vm449, %v419, 0
        %v487 = vsel %vm449, %v420, 0
        %v490 = vsel %vm449, %v421, 0
        %v493 = vsel %vm449, %v422, 0
        %v496 = vsel %vm449, %v423, 0
        %v499 = vsel %vm449, %v424, 0
        %v502 = vsel %vm449, %v425, 0
        %v505 = vsel %vm449, %v426, 0
        %v508 = vsel %vm449, %v427, 0
        %v511 = vsel %vm449, %v428, 0
        %v514 = vsel %vm449, %v429, 0
        %v517 = vsel %vm449, %v430, 0
        %v520 = vsel %vm449, %v431, 0
        %v523 = vsel %vm449, %v432, 0
        %v526 = vsel %vm449, %v433, 0
        %v529 = vsel %vm449, %v434, 0
        %v532 = vsel %vm449, %v435, 0
        %v535 = vsel %vm449, %v436, 0
        %v538 = vsel %vm449, %v437, 0
        %v541 = vsel %vm449, %v438, 0
        %v544 = vsel %vm449, %v439, 0
        %vm546 = vcmask 1040384
        %v548 = vsel %vm546, %v447, 0
        %550 = vmatprep.subr.bf16.mxu0 0
        %551 = vmatpush1.bf16.msra.mxu0 %v446
        %552 = vmatprep.subr.bf16.mxu0 0
        %553 = vmatpush1.bf16.msra.mxu0 %v548
        %554 = vmatprep.subr.bf16.mxu0 0
        %555 = vmatpush1.bf16.msra.mxu0 0
        %556 = vmatprep.subr.bf16.mxu0 0
        %557 = vmatpush1.bf16.msra.mxu0 0
        %558 = vmatprep.subr.bf16.mxu0 0
        %559 = vmatpush1.bf16.msra.mxu0 0
        %560 = vmatprep.subr.bf16.mxu0 0
        %561 = vmatpush1.bf16.msra.mxu0 0
        %562 = vmatprep.subr.bf16.mxu0 0
        %563 = vmatpush1.bf16.msra.mxu0 0
        %564 = vmatprep.subr.bf16.mxu0 0
        %565 = vmatpush1.bf16.msra.mxu0 0
        %566 = vmatprep.subr.bf16.mxu0 0
        %567 = vmatpush1.bf16.msra.mxu0 0
        %568 = vmatprep.subr.bf16.mxu0 0
        %569 = vmatpush1.bf16.msra.mxu0 0
        %570 = vmatprep.subr.bf16.mxu0 0
        %571 = vmatpush1.bf16.msra.mxu0 0
        %572 = vmatprep.subr.bf16.mxu0 0
        %573 = vmatpush1.bf16.msra.mxu0 0
        %574 = vmatprep.subr.bf16.mxu0 0
        %575 = vmatpush1.bf16.msra.mxu0 0
        %576 = vmatprep.subr.bf16.mxu0 0
        %577 = vmatpush1.bf16.msra.mxu0 0
        %578 = vmatprep.subr.bf16.mxu0 0
        %579 = vmatpush1.bf16.msra.mxu0 0
        %580 = vmatprep.subr.bf16.mxu0 0
        %581 = vmatpush1.bf16.msra.mxu0 0
        %582 = vmatprep.mubr.bf16.mxu0 0
        %583 = vmatmul.mubr.bf16.gmra.mrb[0].mxu0 %v451
        %v584 = vpop.f32.mrb[0].mxu0
        %v585 = vadd.f32 0.0, %v584
        %v586 = vpop.f32.mrb[0].mxu0
        %v587 = vpop.f32.mrb[0].mxu0
        %v588 = vadd.f32 0.0, %v587
        %v589 = vpop.f32.mrb[0].mxu0
        %590 = vmatprep.mubr.bf16.mxu0 0
        %591 = vmatmul.mubr.bf16.gmra.mrb[0].mxu0 %v454
        %v592 = vpop.f32.mrb[0].mxu0
        %v593 = vadd.f32 0.0, %v592
        %v594 = vpop.f32.mrb[0].mxu0
        %v595 = vpop.f32.mrb[0].mxu0
        %v596 = vadd.f32 0.0, %v595
        %v597 = vpop.f32.mrb[0].mxu0
        %598 = vmatprep.mubr.bf16.mxu0 0
        %599 = vmatmul.mubr.bf16.gmra.mrb[0].mxu0 %v457
        %v600 = vpop.f32.mrb[0].mxu0
        %v601 = vadd.f32 0.0, %v600
        %v602 = vpop.f32.mrb[0].mxu0
        %v603 = vpop.f32.mrb[0].mxu0
        %v604 = vadd.f32 0.0, %v603
        %v605 = vpop.f32.mrb[0].mxu0
        %606 = vmatprep.mubr.bf16.mxu0 0
        %607 = vmatmul.mubr.bf16.gmra.mrb[0].mxu0 %v460
        %v608 = vpop.f32.mrb[0].mxu0
        %v609 = vadd.f32 0.0, %v608
        %v610 = vpop.f32.mrb[0].mxu0
        %v611 = vpop.f32.mrb[0].mxu0
        %v612 = vadd.f32 0.0, %v611
        %v613 = vpop.f32.mrb[0].mxu0
        %614 = vmatprep.mubr.bf16.mxu0 0
        %615 = vmatmul.mubr.bf16.gmra.mrb[0].mxu0 %v463
        %v616 = vpop.f32.mrb[0].mxu0
        %v617 = vadd.f32 0.0, %v616
        %v618 = vpop.f32.mrb[0].mxu0
        %v619 = vpop.f32.mrb[0].mxu0
        %v620 = vadd.f32 0.0, %v619
        %v621 = vpop.f32.mrb[0].mxu0
        %622 = vmatprep.mubr.bf16.mxu0 0
        %623 = vmatmul.mubr.bf16.gmra.mrb[0].mxu0 %v466
        %v624 = vpop.f32.mrb[0].mxu0
        %v625 = vadd.f32 0.0, %v624
        %v626 = vpop.f32.mrb[0].mxu0
        %v627 = vpop.f32.mrb[0].mxu0
        %v628 = vadd.f32 0.0, %v627
        %v629 = vpop.f32.mrb[0].mxu0
        %630 = vmatprep.mubr.bf16.mxu0 0
        %631 = vmatmul.mubr.bf16.gmra.mrb[0].mxu0 %v469
        %v632 = vpop.f32.mrb[0].mxu0
        %v633 = vadd.f32 0.0, %v632
        %v634 = vpop.f32.mrb[0].mxu0
        %v635 = vpop.f32.mrb[0].mxu0
        %v636 = vadd.f32 0.0, %v635
        %v637 = vpop.f32.mrb[0].mxu0
        %638 = vmatprep.mubr.bf16.mxu0 0
        %639 = vmatmul.mubr.bf16.gmra.mrb[0].mxu0 %v472
        %v640 = vpop.f32.mrb[0].mxu0
        %v641 = vadd.f32 0.0, %v640
        %v642 = vpop.f32.mrb[0].mxu0
        %v643 = vpop.f32.mrb[0].mxu0
        %v644 = vadd.f32 0.0, %v643
        %v645 = vpop.f32.mrb[0].mxu0
        %646 = vmatprep.mubr.bf16.mxu0 0
        %647 = vmatmul.mubr.bf16.gmra.mrb[0].mxu0 %v475
        %v648 = vpop.f32.mrb[0].mxu0
        %v649 = vadd.f32 0.0, %v648
        %v650 = vpop.f32.mrb[0].mxu0
        %v651 = vpop.f32.mrb[0].mxu0
        %v652 = vadd.f32 0.0, %v651
        %v653 = vpop.f32.mrb[0].mxu0
        %654 = vmatprep.mubr.bf16.mxu0 0
        %655 = vmatmul.mubr.bf16.gmra.mrb[0].mxu0 %v478
        %v656 = vpop.f32.mrb[0].mxu0
        %v657 = vadd.f32 0.0, %v656
        %v658 = vpop.f32.mrb[0].mxu0
        %v659 = vpop.f32.mrb[0].mxu0
        %v660 = vadd.f32 0.0, %v659
        %v661 = vpop.f32.mrb[0].mxu0
        %662 = vmatprep.mubr.bf16.mxu0 0
        %663 = vmatmul.mubr.bf16.gmra.mrb[0].mxu0 %v481
        %v664 = vpop.f32.mrb[0].mxu0
        %v665 = vadd.f32 0.0, %v664
        %v666 = vpop.f32.mrb[0].mxu0
        %v667 = vpop.f32.mrb[0].mxu0
        %v668 = vadd.f32 0.0, %v667
        %v669 = vpop.f32.mrb[0].mxu0
        %670 = vmatprep.mubr.bf16.mxu0 0
        %671 = vmatmul.mubr.bf16.gmra.mrb[0].mxu0 %v484
        %v672 = vpop.f32.mrb[0].mxu0
        %v673 = vadd.f32 0.0, %v672
        %v674 = vpop.f32.mrb[0].mxu0
        %v675 = vpop.f32.mrb[0].mxu0
        %v676 = vadd.f32 0.0, %v675
        %v677 = vpop.f32.mrb[0].mxu0
        %678 = vmatprep.mubr.bf16.mxu0 0
        %679 = vmatmul.mubr.bf16.gmra.mrb[0].mxu0 %v487
        %v680 = vpop.f32.mrb[0].mxu0
        %v681 = vadd.f32 0.0, %v680
        %v682 = vpop.f32.mrb[0].mxu0
        %v683 = vpop.f32.mrb[0].mxu0
        %v684 = vadd.f32 0.0, %v683
        %v685 = vpop.f32.mrb[0].mxu0
        %686 = vmatprep.mubr.bf16.mxu0 0
        %687 = vmatmul.mubr.bf16.gmra.mrb[0].mxu0 %v490
        %v688 = vpop.f32.mrb[0].mxu0
        %v689 = vadd.f32 0.0, %v688
        %v690 = vpop.f32.mrb[0].mxu0
        %v691 = vpop.f32.mrb[0].mxu0
        %v692 = vadd.f32 0.0, %v691
        %v693 = vpop.f32.mrb[0].mxu0
        %694 = vmatprep.mubr.bf16.mxu0 0
        %695 = vmatmul.mubr.bf16.gmra.mrb[0].mxu0 %v493
        %v696 = vpop.f32.mrb[0].mxu0
        %v697 = vadd.f32 0.0, %v696
        %v698 = vpop.f32.mrb[0].mxu0
        %v699 = vpop.f32.mrb[0].mxu0
        %v700 = vadd.f32 0.0, %v699
        %v701 = vpop.f32.mrb[0].mxu0
        %702 = vmatprep.mubr.bf16.mxu0 0
        %703 = vmatmul.mubr.bf16.gmra.mrb[0].mxu0 %v496
        %v704 = vpop.f32.mrb[0].mxu0
        %v705 = vadd.f32 0.0, %v704
        %v706 = vpop.f32.mrb[0].mxu0
        %v707 = vpop.f32.mrb[0].mxu0
        %v708 = vadd.f32 0.0, %v707
        %v709 = vpop.f32.mrb[0].mxu0
        %710 = vmatprep.mubr.bf16.mxu0 0
        %711 = vmatmul.mubr.bf16.gmra.mrb[0].mxu0 %v499
        %v712 = vpop.f32.mrb[0].mxu0
        %v713 = vadd.f32 0.0, %v712
        %v714 = vpop.f32.mrb[0].mxu0
        %v715 = vpop.f32.mrb[0].mxu0
        %v716 = vadd.f32 0.0, %v715
        %v717 = vpop.f32.mrb[0].mxu0
        %718 = vmatprep.mubr.bf16.mxu0 0
        %719 = vmatmul.mubr.bf16.gmra.mrb[0].mxu0 %v502
        %v720 = vpop.f32.mrb[0].mxu0
        %v721 = vadd.f32 0.0, %v720
        %v722 = vpop.f32.mrb[0].mxu0
        %v723 = vpop.f32.mrb[0].mxu0
        %v724 = vadd.f32 0.0, %v723
        %v725 = vpop.f32.mrb[0].mxu0
        %726 = vmatprep.mubr.bf16.mxu0 0
        %727 = vmatmul.mubr.bf16.gmra.mrb[0].mxu0 %v505
        %v728 = vpop.f32.mrb[0].mxu0
        %v729 = vadd.f32 0.0, %v728
        %v730 = vpop.f32.mrb[0].mxu0
        %v731 = vpop.f32.mrb[0].mxu0
        %v732 = vadd.f32 0.0, %v731
        %v733 = vpop.f32.mrb[0].mxu0
        %734 = vmatprep.mubr.bf16.mxu0 0
        %735 = vmatmul.mubr.bf16.gmra.mrb[0].mxu0 %v508
        %v736 = vpop.f32.mrb[0].mxu0
        %v737 = vadd.f32 0.0, %v736
        %v738 = vpop.f32.mrb[0].mxu0
        %v739 = vpop.f32.mrb[0].mxu0
        %v740 = vadd.f32 0.0, %v739
        %v741 = vpop.f32.mrb[0].mxu0
        %742 = vmatprep.mubr.bf16.mxu0 0
        %743 = vmatmul.mubr.bf16.gmra.mrb[0].mxu0 %v511
        %v744 = vpop.f32.mrb[0].mxu0
        %v745 = vadd.f32 0.0, %v744
        %v746 = vpop.f32.mrb[0].mxu0
        %v747 = vpop.f32.mrb[0].mxu0
        %v748 = vadd.f32 0.0, %v747
        %v749 = vpop.f32.mrb[0].mxu0
        %750 = vmatprep.mubr.bf16.mxu0 0
        %751 = vmatmul.mubr.bf16.gmra.mrb[0].mxu0 %v514
        %v752 = vpop.f32.mrb[0].mxu0
        %v753 = vadd.f32 0.0, %v752
        %v754 = vpop.f32.mrb[0].mxu0
        %v755 = vpop.f32.mrb[0].mxu0
        %v756 = vadd.f32 0.0, %v755
        %v757 = vpop.f32.mrb[0].mxu0
        %758 = vmatprep.mubr.bf16.mxu0 0
        %759 = vmatmul.mubr.bf16.gmra.mrb[0].mxu0 %v517
        %v760 = vpop.f32.mrb[0].mxu0
        %v761 = vadd.f32 0.0, %v760
        %v762 = vpop.f32.mrb[0].mxu0
        %v763 = vpop.f32.mrb[0].mxu0
        %v764 = vadd.f32 0.0, %v763
        %v765 = vpop.f32.mrb[0].mxu0
        %766 = vmatprep.mubr.bf16.mxu0 0
        %767 = vmatmul.mubr.bf16.gmra.mrb[0].mxu0 %v520
        %v768 = vpop.f32.mrb[0].mxu0
        %v769 = vadd.f32 0.0, %v768
        %v770 = vpop.f32.mrb[0].mxu0
        %v771 = vpop.f32.mrb[0].mxu0
        %v772 = vadd.f32 0.0, %v771
        %v773 = vpop.f32.mrb[0].mxu0
        %774 = vmatprep.mubr.bf16.mxu0 0
        %775 = vmatmul.mubr.bf16.gmra.mrb[0].mxu0 %v523
        %v776 = vpop.f32.mrb[0].mxu0
        %v777 = vadd.f32 0.0, %v776
        %v778 = vpop.f32.mrb[0].mxu0
        %v779 = vpop.f32.mrb[0].mxu0
        %v780 = vadd.f32 0.0, %v779
        %v781 = vpop.f32.mrb[0].mxu0
        %782 = vmatprep.mubr.bf16.mxu0 0
        %783 = vmatmul.mubr.bf16.gmra.mrb[0].mxu0 %v526
        %v784 = vpop.f32.mrb[0].mxu0
        %v785 = vadd.f32 0.0, %v784
        %v786 = vpop.f32.mrb[0].mxu0
        %v787 = vpop.f32.mrb[0].mxu0
        %v788 = vadd.f32 0.0, %v787
        %v789 = vpop.f32.mrb[0].mxu0
        %790 = vmatprep.mubr.bf16.mxu0 0
        %791 = vmatmul.mubr.bf16.gmra.mrb[0].mxu0 %v529
        %v792 = vpop.f32.mrb[0].mxu0
        %v793 = vadd.f32 0.0, %v792
        %v794 = vpop.f32.mrb[0].mxu0
        %v795 = vpop.f32.mrb[0].mxu0
        %v796 = vadd.f32 0.0, %v795
        %v797 = vpop.f32.mrb[0].mxu0
        %798 = vmatprep.mubr.bf16.mxu0 0
        %799 = vmatmul.mubr.bf16.gmra.mrb[0].mxu0 %v532
        %v800 = vpop.f32.mrb[0].mxu0
        %v801 = vadd.f32 0.0, %v800
        %v802 = vpop.f32.mrb[0].mxu0
        %v803 = vpop.f32.mrb[0].mxu0
        %v804 = vadd.f32 0.0, %v803
        %v805 = vpop.f32.mrb[0].mxu0
        %806 = vmatprep.mubr.bf16.mxu0 0
        %807 = vmatmul.mubr.bf16.gmra.mrb[0].mxu0 %v535
        %v808 = vpop.f32.mrb[0].mxu0
        %v809 = vadd.f32 0.0, %v808
        %v810 = vpop.f32.mrb[0].mxu0
        %v811 = vpop.f32.mrb[0].mxu0
        %v812 = vadd.f32 0.0, %v811
        %v813 = vpop.f32.mrb[0].mxu0
        %814 = vmatprep.mubr.bf16.mxu0 0
        %815 = vmatmul.mubr.bf16.gmra.mrb[0].mxu0 %v538
        %v816 = vpop.f32.mrb[0].mxu0
        %v817 = vadd.f32 0.0, %v816
        %v818 = vpop.f32.mrb[0].mxu0
        %v819 = vpop.f32.mrb[0].mxu0
        %v820 = vadd.f32 0.0, %v819
        %v821 = vpop.f32.mrb[0].mxu0
        %822 = vmatprep.mubr.bf16.mxu0 0
        %823 = vmatmul.mubr.bf16.gmra.mrb[0].mxu0 %v541
        %v824 = vpop.f32.mrb[0].mxu0
        %v825 = vadd.f32 0.0, %v824
        %v826 = vpop.f32.mrb[0].mxu0
        %v827 = vpop.f32.mrb[0].mxu0
        %v828 = vadd.f32 0.0, %v827
        %v829 = vpop.f32.mrb[0].mxu0
        %830 = vmatprep.mubr.bf16.mxu0 0
        %831 = vmatmul.mubr.bf16.gmra.mrb[0].mxu0 %v544
        %v832 = vpop.f32.mrb[0].mxu0
        %v833 = vadd.f32 0.0, %v832
        %v834 = vpop.f32.mrb[0].mxu0
        %v835 = vpop.f32.mrb[0].mxu0
        %v836 = vadd.f32 0.0, %v835
        %v837 = vpop.f32.mrb[0].mxu0
        %838 = vdwg.mxu0
        %v839 = vld [vmem:[%s2] sm:$0x1]
        %v841 = vlaneseq
        %v842 = vshrl.u32 %v841, 7
        %v843 = vsub.s32 0, %v842
        %v844 = vrot.slane %v839, %v843
        %v846 = vadd.f32 %v585, %v844
        %v847 = vadd.f32 %v588, %v844
        %v848 = vadd.f32 %v593, %v844
        %v849 = vadd.f32 %v596, %v844
        %v850 = vadd.f32 %v601, %v844
        %v851 = vadd.f32 %v604, %v844
        %v852 = vadd.f32 %v609, %v844
        %v853 = vadd.f32 %v612, %v844
        %v854 = vadd.f32 %v617, %v844
        %v855 = vadd.f32 %v620, %v844
        %v856 = vadd.f32 %v625, %v844
        %v857 = vadd.f32 %v628, %v844
        %v858 = vadd.f32 %v633, %v844
        %v859 = vadd.f32 %v636, %v844
        %v860 = vadd.f32 %v641, %v844
        %v861 = vadd.f32 %v644, %v844
        %v862 = vadd.f32 %v649, %v844
        %v863 = vadd.f32 %v652, %v844
        %v864 = vadd.f32 %v657, %v844
        %v865 = vadd.f32 %v660, %v844
        %v866 = vadd.f32 %v665, %v844
        %v867 = vadd.f32 %v668, %v844
        %v868 = vadd.f32 %v673, %v844
        %v869 = vadd.f32 %v676, %v844
        %v870 = vadd.f32 %v681, %v844
        %v871 = vadd.f32 %v684, %v844
        %v872 = vadd.f32 %v689, %v844
        %v873 = vadd.f32 %v692, %v844
        %v874 = vadd.f32 %v697, %v844
        %v875 = vadd.f32 %v700, %v844
        %v876 = vadd.f32 %v705, %v844
        %v877 = vadd.f32 %v708, %v844
        %v878 = vadd.f32 %v713, %v844
        %v879 = vadd.f32 %v716, %v844
        %v880 = vadd.f32 %v721, %v844
        %v881 = vadd.f32 %v724, %v844
        %v882 = vadd.f32 %v729, %v844
        %v883 = vadd.f32 %v732, %v844
        %v884 = vadd.f32 %v737, %v844
        %v885 = vadd.f32 %v740, %v844
        %v886 = vadd.f32 %v745, %v844
        %v887 = vadd.f32 %v748, %v844
        %v888 = vadd.f32 %v753, %v844
        %v889 = vadd.f32 %v756, %v844
        %v890 = vadd.f32 %v761, %v844
        %v891 = vadd.f32 %v764, %v844
        %v892 = vadd.f32 %v769, %v844
        %v893 = vadd.f32 %v772, %v844
        %v894 = vadd.f32 %v777, %v844
        %v895 = vadd.f32 %v780, %v844
        %v896 = vadd.f32 %v785, %v844
        %v897 = vadd.f32 %v788, %v844
        %v898 = vadd.f32 %v793, %v844
        %v899 = vadd.f32 %v796, %v844
        %v900 = vadd.f32 %v801, %v844
        %v901 = vadd.f32 %v804, %v844
        %v902 = vadd.f32 %v809, %v844
        %v903 = vadd.f32 %v812, %v844
        %v904 = vadd.f32 %v817, %v844
        %v905 = vadd.f32 %v820, %v844
        %v906 = vadd.f32 %v825, %v844
        %v907 = vadd.f32 %v828, %v844
        %v908 = vadd.f32 %v833, %v844
        %v909 = vadd.f32 %v836, %v844
        %vm910 = vcmask 261120
        %911 = vst.msk [vmem:[%s210] sm:$0xff] %vm910, %v846
        %912 = vst.msk [vmem:[%s210 + $0x8] sm:$0xff] %vm910, %v847
        %913 = vst.msk [vmem:[%s210 + $0x10] sm:$0xff] %vm910, %v848
        %914 = vst.msk [vmem:[%s210 + $0x18] sm:$0xff] %vm910, %v849
        %915 = vst.msk [vmem:[%s210 + $0x20] sm:$0xff] %vm910, %v850
        %916 = vst.msk [vmem:[%s210 + $0x28] sm:$0xff] %vm910, %v851
        %917 = vst.msk [vmem:[%s210 + $0x30] sm:$0xff] %vm910, %v852
        %918 = vst.msk [vmem:[%s210 + $0x38] sm:$0xff] %vm910, %v853
        %919 = vst.msk [vmem:[%s210 + $0x40] sm:$0xff] %vm910, %v854
        %920 = vst.msk [vmem:[%s210 + $0x48] sm:$0xff] %vm910, %v855
        %921 = vst.msk [vmem:[%s210 + $0x50] sm:$0xff] %vm910, %v856
        %922 = vst.msk [vmem:[%s210 + $0x58] sm:$0xff] %vm910, %v857
        %923 = vst.msk [vmem:[%s210 + $0x60] sm:$0xff] %vm910, %v858
        %924 = vst.msk [vmem:[%s210 + $0x68] sm:$0xff] %vm910, %v859
        %925 = vst.msk [vmem:[%s210 + $0x70] sm:$0xff] %vm910, %v860
        %926 = vst.msk [vmem:[%s210 + $0x78] sm:$0xff] %vm910, %v861
        %927 = vst.msk [vmem:[%s210 + $0x80] sm:$0xff] %vm910, %v862
        %928 = vst.msk [vmem:[%s210 + $0x88] sm:$0xff] %vm910, %v863
        %929 = vst.msk [vmem:[%s210 + $0x90] sm:$0xff] %vm910, %v864
        %930 = vst.msk [vmem:[%s210 + $0x98] sm:$0xff] %vm910, %v865
        %931 = vst.msk [vmem:[%s210 + $0xa0] sm:$0xff] %vm910, %v866
        %932 = vst.msk [vmem:[%s210 + $0xa8] sm:$0xff] %vm910, %v867
        %933 = vst.msk [vmem:[%s210 + $0xb0] sm:$0xff] %vm910, %v868
        %934 = vst.msk [vmem:[%s210 + $0xb8] sm:$0xff] %vm910, %v869
        %935 = vst.msk [vmem:[%s210 + $0xc0] sm:$0xff] %vm910, %v870
        %936 = vst.msk [vmem:[%s210 + $0xc8] sm:$0xff] %vm910, %v871
        %937 = vst.msk [vmem:[%s210 + $0xd0] sm:$0xff] %vm910, %v872
        %938 = vst.msk [vmem:[%s210 + $0xd8] sm:$0xff] %vm910, %v873
        %939 = vst.msk [vmem:[%s210 + $0xe0] sm:$0xff] %vm910, %v874
        %940 = vst.msk [vmem:[%s210 + $0xe8] sm:$0xff] %vm910, %v875
        %941 = vst.msk [vmem:[%s210 + $0xf0] sm:$0xff] %vm910, %v876
        %942 = vst.msk [vmem:[%s210 + $0xf8] sm:$0xff] %vm910, %v877
        %943 = vst.msk [vmem:[%s210 + $0x100] sm:$0xff] %vm910, %v878
        %944 = vst.msk [vmem:[%s210 + $0x108] sm:$0xff] %vm910, %v879
        %945 = vst.msk [vmem:[%s210 + $0x110] sm:$0xff] %vm910, %v880
        %946 = vst.msk [vmem:[%s210 + $0x118] sm:$0xff] %vm910, %v881
        %947 = vst.msk [vmem:[%s210 + $0x120] sm:$0xff] %vm910, %v882
        %948 = vst.msk [vmem:[%s210 + $0x128] sm:$0xff] %vm910, %v883
        %949 = vst.msk [vmem:[%s210 + $0x130] sm:$0xff] %vm910, %v884
        %950 = vst.msk [vmem:[%s210 + $0x138] sm:$0xff] %vm910, %v885
        %951 = vst.msk [vmem:[%s210 + $0x140] sm:$0xff] %vm910, %v886
        %952 = vst.msk [vmem:[%s210 + $0x148] sm:$0xff] %vm910, %v887
        %953 = vst.msk [vmem:[%s210 + $0x150] sm:$0xff] %vm910, %v888
        %954 = vst.msk [vmem:[%s210 + $0x158] sm:$0xff] %vm910, %v889
        %955 = vst.msk [vmem:[%s210 + $0x160] sm:$0xff] %vm910, %v890
        %956 = vst.msk [vmem:[%s210 + $0x168] sm:$0xff] %vm910, %v891
        %957 = vst.msk [vmem:[%s210 + $0x170] sm:$0xff] %vm910, %v892
        %958 = vst.msk [vmem:[%s210 + $0x178] sm:$0xff] %vm910, %v893
        %959 = vst.msk [vmem:[%s210 + $0x180] sm:$0xff] %vm910, %v894
        %960 = vst.msk [vmem:[%s210 + $0x188] sm:$0xff] %vm910, %v895
        %961 = vst.msk [vmem:[%s210 + $0x190] sm:$0xff] %vm910, %v896
        %962 = vst.msk [vmem:[%s210 + $0x198] sm:$0xff] %vm910, %v897
        %963 = vst.msk [vmem:[%s210 + $0x1a0] sm:$0xff] %vm910, %v898
        %964 = vst.msk [vmem:[%s210 + $0x1a8] sm:$0xff] %vm910, %v899
        %965 = vst.msk [vmem:[%s210 + $0x1b0] sm:$0xff] %vm910, %v900
        %966 = vst.msk [vmem:[%s210 + $0x1b8] sm:$0xff] %vm910, %v901
        %967 = vst.msk [vmem:[%s210 + $0x1c0] sm:$0xff] %vm910, %v902
        %968 = vst.msk [vmem:[%s210 + $0x1c8] sm:$0xff] %vm910, %v903
        %969 = vst.msk [vmem:[%s210 + $0x1d0] sm:$0xff] %vm910, %v904
        %970 = vst.msk [vmem:[%s210 + $0x1d8] sm:$0xff] %vm910, %v905
        %971 = vst.msk [vmem:[%s210 + $0x1e0] sm:$0xff] %vm910, %v906
        %972 = vst.msk [vmem:[%s210 + $0x1e8] sm:$0xff] %vm910, %v907
        %973 = vst.msk [vmem:[%s210 + $0x1f0] sm:$0xff] %vm910, %v908
        %974 = vst.msk [vmem:[%s210 + $0x1f8] sm:$0xff] %vm910, %v909
        %v975 = vsel %vm910, %v585, 0.0
        %v976 = vsel %vm910, %v588, 0.0
        %v977 = vadd.f32 %v975, %v976
        %v978 = vsel %vm910, %v593, 0.0
        %v979 = vadd.f32 %v977, %v978
        %v980 = vsel %vm910, %v596, 0.0
        %v981 = vadd.f32 %v979, %v980
        %v982 = vsel %vm910, %v601, 0.0
        %v983 = vadd.f32 %v981, %v982
        %v984 = vsel %vm910, %v604, 0.0
        %v985 = vadd.f32 %v983, %v984
        %v986 = vsel %vm910, %v609, 0.0
        %v987 = vadd.f32 %v985, %v986
        %v988 = vsel %vm910, %v612, 0.0
        %v989 = vadd.f32 %v987, %v988
        %v990 = vsel %vm910, %v617, 0.0
        %v991 = vadd.f32 %v989, %v990
        %v992 = vsel %vm910, %v620, 0.0
        %v993 = vadd.f32 %v991, %v992
        %v994 = vsel %vm910, %v625, 0.0
        %v995 = vadd.f32 %v993, %v994
        %v996 = vsel %vm910, %v628, 0.0
        %v997 = vadd.f32 %v995, %v996
        %v998 = vsel %vm910, %v633, 0.0
        %v999 = vadd.f32 %v997, %v998
        %v1000 = vsel %vm910, %v636, 0.0
        %v1001 = vadd.f32 %v999, %v1000
        %v1002 = vsel %vm910, %v641, 0.0
        %v1003 = vadd.f32 %v1001, %v1002
        %v1004 = vsel %vm910, %v644, 0.0
        %v1005 = vadd.f32 %v1003, %v1004
        %v1006 = vsel %vm910, %v649, 0.0
        %v1007 = vadd.f32 %v1005, %v1006
        %v1008 = vsel %vm910, %v652, 0.0
        %v1009 = vadd.f32 %v1007, %v1008
        %v1010 = vsel %vm910, %v657, 0.0
        %v1011 = vadd.f32 %v1009, %v1010
        %v1012 = vsel %vm910, %v660, 0.0
        %v1013 = vadd.f32 %v1011, %v1012
        %v1014 = vsel %vm910, %v665, 0.0
        %v1015 = vadd.f32 %v1013, %v1014
        %v1016 = vsel %vm910, %v668, 0.0
        %v1017 = vadd.f32 %v1015, %v1016
        %v1018 = vsel %vm910, %v673, 0.0
        %v1019 = vadd.f32 %v1017, %v1018
        %v1020 = vsel %vm910, %v676, 0.0
        %v1021 = vadd.f32 %v1019, %v1020
        %v1022 = vsel %vm910, %v681, 0.0
        %v1023 = vadd.f32 %v1021, %v1022
        %v1024 = vsel %vm910, %v684, 0.0
        %v1025 = vadd.f32 %v1023, %v1024
        %v1026 = vsel %vm910, %v689, 0.0
        %v1027 = vadd.f32 %v1025, %v1026
        %v1028 = vsel %vm910, %v692, 0.0
        %v1029 = vadd.f32 %v1027, %v1028
        %v1030 = vsel %vm910, %v697, 0.0
        %v1031 = vadd.f32 %v1029, %v1030
        %v1032 = vsel %vm910, %v700, 0.0
        %v1033 = vadd.f32 %v1031, %v1032
        %v1034 = vsel %vm910, %v705, 0.0
        %v1035 = vadd.f32 %v1033, %v1034
        %v1036 = vsel %vm910, %v708, 0.0
        %v1037 = vadd.f32 %v1035, %v1036
        %v1038 = vsel %vm910, %v713, 0.0
        %v1039 = vadd.f32 %v1037, %v1038
        %v1040 = vsel %vm910, %v716, 0.0
        %v1041 = vadd.f32 %v1039, %v1040
        %v1042 = vsel %vm910, %v721, 0.0
        %v1043 = vadd.f32 %v1041, %v1042
        %v1044 = vsel %vm910, %v724, 0.0
        %v1045 = vadd.f32 %v1043, %v1044
        %v1046 = vsel %vm910, %v729, 0.0
        %v1047 = vadd.f32 %v1045, %v1046
        %v1048 = vsel %vm910, %v732, 0.0
        %v1049 = vadd.f32 %v1047, %v1048
        %v1050 = vsel %vm910, %v737, 0.0
        %v1051 = vadd.f32 %v1049, %v1050
        %v1052 = vsel %vm910, %v740, 0.0
        %v1053 = vadd.f32 %v1051, %v1052
        %v1054 = vsel %vm910, %v745, 0.0
        %v1055 = vadd.f32 %v1053, %v1054
        %v1056 = vsel %vm910, %v748, 0.0
        %v1057 = vadd.f32 %v1055, %v1056
        %v1058 = vsel %vm910, %v753, 0.0
        %v1059 = vadd.f32 %v1057, %v1058
        %v1060 = vsel %vm910, %v756, 0.0
        %v1061 = vadd.f32 %v1059, %v1060
        %v1062 = vsel %vm910, %v761, 0.0
        %v1063 = vadd.f32 %v1061, %v1062
        %v1064 = vsel %vm910, %v764, 0.0
        %v1065 = vadd.f32 %v1063, %v1064
        %v1066 = vsel %vm910, %v769, 0.0
        %v1067 = vadd.f32 %v1065, %v1066
        %v1068 = vsel %vm910, %v772, 0.0
        %v1069 = vadd.f32 %v1067, %v1068
        %v1070 = vsel %vm910, %v777, 0.0
        %v1071 = vadd.f32 %v1069, %v1070
        %v1072 = vsel %vm910, %v780, 0.0
        %v1073 = vadd.f32 %v1071, %v1072
        %v1074 = vsel %vm910, %v785, 0.0
        %v1075 = vadd.f32 %v1073, %v1074
        %v1076 = vsel %vm910, %v788, 0.0
        %v1077 = vadd.f32 %v1075, %v1076
        %v1078 = vsel %vm910, %v793, 0.0
        %v1079 = vadd.f32 %v1077, %v1078
        %v1080 = vsel %vm910, %v796, 0.0
        %v1081 = vadd.f32 %v1079, %v1080
        %v1082 = vsel %vm910, %v801, 0.0
        %v1083 = vadd.f32 %v1081, %v1082
        %v1084 = vsel %vm910, %v804, 0.0
        %v1085 = vadd.f32 %v1083, %v1084
        %v1086 = vsel %vm910, %v809, 0.0
        %v1087 = vadd.f32 %v1085, %v1086
        %v1088 = vsel %vm910, %v812, 0.0
        %v1089 = vadd.f32 %v1087, %v1088
        %v1090 = vsel %vm910, %v817, 0.0
        %v1091 = vadd.f32 %v1089, %v1090
        %v1092 = vsel %vm910, %v820, 0.0
        %v1093 = vadd.f32 %v1091, %v1092
        %v1094 = vsel %vm910, %v825, 0.0
        %v1095 = vadd.f32 %v1093, %v1094
        %v1096 = vsel %vm910, %v828, 0.0
        %v1097 = vadd.f32 %v1095, %v1096
        %v1098 = vsel %vm910, %v833, 0.0
        %v1099 = vadd.f32 %v1097, %v1098
        %v1100 = vsel %vm910, %v836, 0.0
        %v1101 = vadd.f32 %v1099, %v1100
        %v1102 = vrot.slane %v1101, 4
        %v1103 = vadd.f32 %v1101, %v1102
        %v1104 = vrot.slane %v1103, 2
        %v1105 = vadd.f32 %v1103, %v1104
        %v1106 = vrot.slane %v1105, 1
        %v1107 = vadd.f32 %v1105, %v1106
        %v1108 = vmul.f32 %v585, %v585
        %v1109 = vmul.f32 %v588, %v588
        %v1110 = vmul.f32 %v593, %v593
        %v1111 = vmul.f32 %v596, %v596
        %v1112 = vmul.f32 %v601, %v601
        %v1113 = vmul.f32 %v604, %v604
        %v1114 = vmul.f32 %v609, %v609
        %v1115 = vmul.f32 %v612, %v612
        %v1116 = vmul.f32 %v617, %v617
        %v1117 = vmul.f32 %v620, %v620
        %v1118 = vmul.f32 %v625, %v625
        %v1119 = vmul.f32 %v628, %v628
        %v1120 = vmul.f32 %v633, %v633
        %v1121 = vmul.f32 %v636, %v636
        %v1122 = vmul.f32 %v641, %v641
        %v1123 = vmul.f32 %v644, %v644
        %v1124 = vmul.f32 %v649, %v649
        %v1125 = vmul.f32 %v652, %v652
        %v1126 = vmul.f32 %v657, %v657
        %v1127 = vmul.f32 %v660, %v660
        %v1128 = vmul.f32 %v665, %v665
        %v1129 = vmul.f32 %v668, %v668
        %v1130 = vmul.f32 %v673, %v673
        %v1131 = vmul.f32 %v676, %v676
        %v1132 = vmul.f32 %v681, %v681
        %v1133 = vmul.f32 %v684, %v684
        %v1134 = vmul.f32 %v689, %v689
        %v1135 = vmul.f32 %v692, %v692
        %v1136 = vmul.f32 %v697, %v697
        %v1137 = vmul.f32 %v700, %v700
        %v1138 = vmul.f32 %v705, %v705
        %v1139 = vmul.f32 %v708, %v708
        %v1140 = vmul.f32 %v713, %v713
        %v1141 = vmul.f32 %v716, %v716
        %v1142 = vmul.f32 %v721, %v721
        %v1143 = vmul.f32 %v724, %v724
        %v1144 = vmul.f32 %v729, %v729
        %v1145 = vmul.f32 %v732, %v732
        %v1146 = vmul.f32 %v737, %v737
        %v1147 = vmul.f32 %v740, %v740
        %v1148 = vmul.f32 %v745, %v745
        %v1149 = vmul.f32 %v748, %v748
        %v1150 = vmul.f32 %v753, %v753
        %v1151 = vmul.f32 %v756, %v756
        %v1152 = vmul.f32 %v761, %v761
        %v1153 = vmul.f32 %v764, %v764
        %v1154 = vmul.f32 %v769, %v769
        %v1155 = vmul.f32 %v772, %v772
        %v1156 = vmul.f32 %v777, %v777
        %v1157 = vmul.f32 %v780, %v780
        %v1158 = vmul.f32 %v785, %v785
        %v1159 = vmul.f32 %v788, %v788
        %v1160 = vmul.f32 %v793, %v793
        %v1161 = vmul.f32 %v796, %v796
        %v1162 = vmul.f32 %v801, %v801
        %v1163 = vmul.f32 %v804, %v804
        %v1164 = vmul.f32 %v809, %v809
        %v1165 = vmul.f32 %v812, %v812
        %v1166 = vmul.f32 %v817, %v817
        %v1167 = vmul.f32 %v820, %v820
        %v1168 = vmul.f32 %v825, %v825
        %v1169 = vmul.f32 %v828, %v828
        %v1170 = vmul.f32 %v833, %v833
        %v1171 = vmul.f32 %v836, %v836
        %v1172 = vsel %vm910, %v1108, 0.0
        %v1173 = vsel %vm910, %v1109, 0.0
        %v1174 = vadd.f32 %v1172, %v1173
        %v1175 = vsel %vm910, %v1110, 0.0
        %v1176 = vadd.f32 %v1174, %v1175
        %v1177 = vsel %vm910, %v1111, 0.0
        %v1178 = vadd.f32 %v1176, %v1177
        %v1179 = vsel %vm910, %v1112, 0.0
        %v1180 = vadd.f32 %v1178, %v1179
        %v1181 = vsel %vm910, %v1113, 0.0
        %v1182 = vadd.f32 %v1180, %v1181
        %v1183 = vsel %vm910, %v1114, 0.0
        %v1184 = vadd.f32 %v1182, %v1183
        %v1185 = vsel %vm910, %v1115, 0.0
        %v1186 = vadd.f32 %v1184, %v1185
        %v1187 = vsel %vm910, %v1116, 0.0
        %v1188 = vadd.f32 %v1186, %v1187
        %v1189 = vsel %vm910, %v1117, 0.0
        %v1190 = vadd.f32 %v1188, %v1189
        %v1191 = vsel %vm910, %v1118, 0.0
        %v1192 = vadd.f32 %v1190, %v1191
        %v1193 = vsel %vm910, %v1119, 0.0
        %v1194 = vadd.f32 %v1192, %v1193
        %v1195 = vsel %vm910, %v1120, 0.0
        %v1196 = vadd.f32 %v1194, %v1195
        %v1197 = vsel %vm910, %v1121, 0.0
        %v1198 = vadd.f32 %v1196, %v1197
        %v1199 = vsel %vm910, %v1122, 0.0
        %v1200 = vadd.f32 %v1198, %v1199
        %v1201 = vsel %vm910, %v1123, 0.0
        %v1202 = vadd.f32 %v1200, %v1201
        %v1203 = vsel %vm910, %v1124, 0.0
        %v1204 = vadd.f32 %v1202, %v1203
        %v1205 = vsel %vm910, %v1125, 0.0
        %v1206 = vadd.f32 %v1204, %v1205
        %v1207 = vsel %vm910, %v1126, 0.0
        %v1208 = vadd.f32 %v1206, %v1207
        %v1209 = vsel %vm910, %v1127, 0.0
        %v1210 = vadd.f32 %v1208, %v1209
        %v1211 = vsel %vm910, %v1128, 0.0
        %v1212 = vadd.f32 %v1210, %v1211
        %v1213 = vsel %vm910, %v1129, 0.0
        %v1214 = vadd.f32 %v1212, %v1213
        %v1215 = vsel %vm910, %v1130, 0.0
        %v1216 = vadd.f32 %v1214, %v1215
        %v1217 = vsel %vm910, %v1131, 0.0
        %v1218 = vadd.f32 %v1216, %v1217
        %v1219 = vsel %vm910, %v1132, 0.0
        %v1220 = vadd.f32 %v1218, %v1219
        %v1221 = vsel %vm910, %v1133, 0.0
        %v1222 = vadd.f32 %v1220, %v1221
        %v1223 = vsel %vm910, %v1134, 0.0
        %v1224 = vadd.f32 %v1222, %v1223
        %v1225 = vsel %vm910, %v1135, 0.0
        %v1226 = vadd.f32 %v1224, %v1225
        %v1227 = vsel %vm910, %v1136, 0.0
        %v1228 = vadd.f32 %v1226, %v1227
        %v1229 = vsel %vm910, %v1137, 0.0
        %v1230 = vadd.f32 %v1228, %v1229
        %v1231 = vsel %vm910, %v1138, 0.0
        %v1232 = vadd.f32 %v1230, %v1231
        %v1233 = vsel %vm910, %v1139, 0.0
        %v1234 = vadd.f32 %v1232, %v1233
        %v1235 = vsel %vm910, %v1140, 0.0
        %v1236 = vadd.f32 %v1234, %v1235
        %v1237 = vsel %vm910, %v1141, 0.0
        %v1238 = vadd.f32 %v1236, %v1237
        %v1239 = vsel %vm910, %v1142, 0.0
        %v1240 = vadd.f32 %v1238, %v1239
        %v1241 = vsel %vm910, %v1143, 0.0
        %v1242 = vadd.f32 %v1240, %v1241
        %v1243 = vsel %vm910, %v1144, 0.0
        %v1244 = vadd.f32 %v1242, %v1243
        %v1245 = vsel %vm910, %v1145, 0.0
        %v1246 = vadd.f32 %v1244, %v1245
        %v1247 = vsel %vm910, %v1146, 0.0
        %v1248 = vadd.f32 %v1246, %v1247
        %v1249 = vsel %vm910, %v1147, 0.0
        %v1250 = vadd.f32 %v1248, %v1249
        %v1251 = vsel %vm910, %v1148, 0.0
        %v1252 = vadd.f32 %v1250, %v1251
        %v1253 = vsel %vm910, %v1149, 0.0
        %v1254 = vadd.f32 %v1252, %v1253
        %v1255 = vsel %vm910, %v1150, 0.0
        %v1256 = vadd.f32 %v1254, %v1255
        %v1257 = vsel %vm910, %v1151, 0.0
        %v1258 = vadd.f32 %v1256, %v1257
        %v1259 = vsel %vm910, %v1152, 0.0
        %v1260 = vadd.f32 %v1258, %v1259
        %v1261 = vsel %vm910, %v1153, 0.0
        %v1262 = vadd.f32 %v1260, %v1261
        %v1263 = vsel %vm910, %v1154, 0.0
        %v1264 = vadd.f32 %v1262, %v1263
        %v1265 = vsel %vm910, %v1155, 0.0
        %v1266 = vadd.f32 %v1264, %v1265
        %v1267 = vsel %vm910, %v1156, 0.0
        %v1268 = vadd.f32 %v1266, %v1267
        %v1269 = vsel %vm910, %v1157, 0.0
        %v1270 = vadd.f32 %v1268, %v1269
        %v1271 = vsel %vm910, %v1158, 0.0
        %v1272 = vadd.f32 %v1270, %v1271
        %v1273 = vsel %vm910, %v1159, 0.0
        %v1274 = vadd.f32 %v1272, %v1273
        %v1275 = vsel %vm910, %v1160, 0.0
        %v1276 = vadd.f32 %v1274, %v1275
        %v1277 = vsel %vm910, %v1161, 0.0
        %v1278 = vadd.f32 %v1276, %v1277
        %v1279 = vsel %vm910, %v1162, 0.0
        %v1280 = vadd.f32 %v1278, %v1279
        %v1281 = vsel %vm910, %v1163, 0.0
        %v1282 = vadd.f32 %v1280, %v1281
        %v1283 = vsel %vm910, %v1164, 0.0
        %v1284 = vadd.f32 %v1282, %v1283
        %v1285 = vsel %vm910, %v1165, 0.0
        %v1286 = vadd.f32 %v1284, %v1285
        %v1287 = vsel %vm910, %v1166, 0.0
        %v1288 = vadd.f32 %v1286, %v1287
        %v1289 = vsel %vm910, %v1167, 0.0
        %v1290 = vadd.f32 %v1288, %v1289
        %v1291 = vsel %vm910, %v1168, 0.0
        %v1292 = vadd.f32 %v1290, %v1291
        %v1293 = vsel %vm910, %v1169, 0.0
        %v1294 = vadd.f32 %v1292, %v1293
        %v1295 = vsel %vm910, %v1170, 0.0
        %v1296 = vadd.f32 %v1294, %v1295
        %v1297 = vsel %vm910, %v1171, 0.0
        %v1298 = vadd.f32 %v1296, %v1297
        %v1299 = vrot.slane %v1298, 4
        %v1300 = vadd.f32 %v1298, %v1299
        %v1301 = vrot.slane %v1300, 2
        %v1302 = vadd.f32 %v1300, %v1301
        %v1303 = vrot.slane %v1302, 1
        %v1304 = vadd.f32 %v1302, %v1303
        %v1305 = vsel %vm546, %v1107, %v1304
        %vm1306 = vcmask 254976
        %1307 = vst.msk [vmem:[%s199] sm:$0x3] %vm1306, %v1305
        %s1308 = smul.u32 64, %s19
        %p1309 = scmp.lt.s32.totalorder %s1308, 255
        %s1310 = scalar_select %p1309, %s1308, 255
        %s1311 = smul.addr %s1310, 8
        %s1312 = scalar_lea.vmem %s3, %s1311
        %s1313 = sand.u32 %s121, 1
        %s1314 = scalar_lea.sflag [#allocation3], %s1313
        %s1315 = sand.u32 %s121, 1
        %s1316 = smul.addr %s1315, 2
        %s1317 = scalar_lea.vmem [#allocation2], %s1316
        // Predicated region
        $region33: #{tpu_custom_call.1} parent=31 // pred_check
          %p1318 = pneg %p105
        $region34: #{tpu_custom_call.1} parent=31 // pred_check_branch
          %1320 = sbr.rel (%p1318) target = $region36
        $region35: #{tpu_custom_call.1} parent=31 // pred_region
          %s1321 = smul.u32 64, %s19
        $region36: #{tpu_custom_call.1} parent=31 // pred_fallthru
          _
        // Predicated region
        $region37: #{tpu_custom_call.1} parent=31 // pred_check
          %p1322 = pneg %p131
        $region38: #{tpu_custom_call.1} parent=31 // pred_check_branch
          %1324 = sbr.rel (%p1322) target = $region40
        $region39: #{tpu_custom_call.1} parent=31 // pred_region
          %s1326 = ssub.s32 32, 32
          %1327 = vsyncadd %s1314, %s1326
          %s1328 = smul.addr %s19, 32
          %s1329 = scalar_lea.hbm %s4, %s1328
          %s1331 = sshll.u32 %s1317, 4
          %s1332 = int_to_ptr.vmem [resolvable:$true] %s1331
          %1334 = dma.vmem_to_hbm [thread:$0]  %s1332, 32, %s1329, %s1314
        $region40: #{tpu_custom_call.1} parent=31 // pred_fallthru
          _
      $region32: #{tpu_custom_call.1} parent=5 // pred_fallthru
        _
      %p1335 = scmp.le.s32.totalorder 2, %s14
      // Predicated region
      $region41: #{tpu_custom_call.1} parent=5 // pred_check
        %p1336 = pneg %p1335
      $region42: #{tpu_custom_call.1} parent=5 // pred_check_branch
        %1338 = sbr.rel (%p1336) target = $region44
      $region43: #{tpu_custom_call.1} parent=5 // pred_region
        %s1339 = ssub.s32 %s14, 2
        // Predicated region
        $region45: #{tpu_custom_call.1} parent=43 // pred_check
          %p1340 = pneg %p111
        $region46: #{tpu_custom_call.1} parent=43 // pred_check_branch
          %1342 = sbr.rel (%p1340) target = $region48
        $region47: #{tpu_custom_call.1} parent=43 // pred_region
          %s1343 = smul.u32 64, %s20
          %p1344 = scmp.lt.s32.totalorder %s1343, 255
          %s1345 = scalar_select %p1344, %s1343, 255
          %s1346 = smul.addr %s1345, 8
          %s1347 = scalar_lea.vmem %s3, %s1346
        $region48: #{tpu_custom_call.1} parent=43 // pred_fallthru
          _
        // Predicated region
        $region49: #{tpu_custom_call.1} parent=43 // pred_check
          %p1348 = pneg %p137
        $region50: #{tpu_custom_call.1} parent=43 // pred_check_branch
          %1350 = sbr.rel (%p1348) target = $region52
        $region51: #{tpu_custom_call.1} parent=43 // pred_region
          %s1351 = sand.u32 %s122, 1
          %s1352 = scalar_lea.sflag [#allocation3], %s1351
          %s1353 = sand.u32 %s122, 1
          %s1354 = smul.addr %s1353, 2
          %s1355 = scalar_lea.vmem [#allocation2], %s1354
          %1356 = dma.done %s1352, 32
        $region52: #{tpu_custom_call.1} parent=43 // pred_fallthru
          _
      $region44: #{tpu_custom_call.1} parent=5 // pred_fallthru
        _
    $region6: #{tpu_custom_call.1} parent=1 // loop_footer
      %s18 = sadd.s32 1, %s14
    $region7: #{tpu_custom_call.1} parent=1 // loop_footer_branch
      %13 = sbr.rel target = $region3
    $region8: #{tpu_custom_call.1} parent=1 // loop_exit
      _
    %1357 = vsyncpa [#allocation3], 1
    %s1358 = scalar_lea.sflag [#allocation3], 1
    %1359 = vsyncpa %s1358, 1

</llo_original>
